<compile_context>
chip_gen: v7x
topology: tpu7x:2x2x1
jax: 0.10.0
libtpu: 0.0.40
codegen_flags: <defaults>
</compile_context>

<pallas_src>
import functools

import jax
import jax.numpy as jnp
from jax.experimental import pallas as pl
from jax.experimental.pallas import tpu as pltpu


# ----------------------------- Pallas kernels -------------------------------

def _attn_block_kernel(x_ref, wqkvr_ref, bqkvr_ref, mask_ref, wo_ref, bo_ref,
                       g_ref, beta_ref, o_ref, *, n_heads, scale, eps):
    """Fused: QKVR proj -> per-head attention -> *R -> out proj -> +residual -> LN1.

    Blocks: x_ref (1,S,E), wqkvr (E,4E), bqkvr (1,4E), mask (1,S,S) additive f32,
            wo (E,E), bo/g/beta (1,E), out (1,S,E).  One batch per grid point; all
            heads are handled inside the kernel (no host-side transposes).
    """
    _, S, E = x_ref.shape
    H = n_heads
    Dh = E // H

    x = x_ref[0].astype(jnp.float32)                              # (S, E)
    wqkvr = wqkvr_ref[...].astype(jnp.float32)                    # (E, 4E)
    qkvr = jnp.dot(x, wqkvr, preferred_element_type=jnp.float32)
    qkvr = qkvr + bqkvr_ref[...].astype(jnp.float32)              # (S, 4E)

    add_mask = mask_ref[0]                                        # (S, S), 0 / -1e20
    inv_scale = jnp.float32(1.0 / scale)

    head_outs = []
    for h in range(H):                                            # static unroll over heads
        lo = h * Dh
        qh = qkvr[:, 0 * E + lo:0 * E + lo + Dh]                  # (S, Dh)
        kh = qkvr[:, 1 * E + lo:1 * E + lo + Dh]
        vh = qkvr[:, 2 * E + lo:2 * E + lo + Dh]
        rh = qkvr[:, 3 * E + lo:3 * E + lo + Dh]

        # energy[i, j] = q_i . k_j  (contract head dims, no explicit transpose)
        energy = jax.lax.dot_general(qh, kh, (((1,), (1,)), ((), ())),
                                     preferred_element_type=jnp.float32)
        energy = (energy + add_mask) * inv_scale
        energy = energy - jnp.max(energy, axis=-1, keepdims=True)
        e = jnp.exp(energy)
        # softmax normalization on the EUP path (divide avoided).
        attn = e * pl.reciprocal(jnp.sum(e, axis=-1, keepdims=True), approx=True)
        ctx = jnp.dot(attn, vh, preferred_element_type=jnp.float32)   # (S, Dh)
        head_outs.append(ctx * rh)                                # TP-transformer role binding

    out = jnp.concatenate(head_outs, axis=-1)                     # (S, E), lane-dense
    out = jnp.dot(out, wo_ref[...].astype(jnp.float32),
                  preferred_element_type=jnp.float32)
    out = out + bo_ref[...].astype(jnp.float32)

    res = out + x                                                 # residual (dropout = identity)
    mean = jnp.mean(res, axis=-1, keepdims=True)
    var = jnp.mean((res - mean) ** 2, axis=-1, keepdims=True)
    y = (res - mean) * jax.lax.rsqrt(var + eps)
    y = y * g_ref[...].astype(jnp.float32) + beta_ref[...].astype(jnp.float32)
    o_ref[...] = y.reshape(1, S, E).astype(o_ref.dtype)


def _ffn_ln_kernel(x_ref, w1_ref, b1_ref, w2_ref, b2_ref, g_ref, beta_ref, o_ref, *, eps):
    """Fused FFN: relu(x@W1+b1) stays in VMEM -> @W2+b2 -> +residual -> LN2."""
    x = x_ref[...].astype(jnp.float32)                            # (tm, E)
    h = jnp.dot(x, w1_ref[...].astype(jnp.float32),
                preferred_element_type=jnp.float32)
    h = jnp.maximum(h + b1_ref[...].astype(jnp.float32), 0.0)     # (tm, 4E) never hits HBM
    f = jnp.dot(h, w2_ref[...].astype(jnp.float32),
                preferred_element_type=jnp.float32)
    f = f + b2_ref[...].astype(jnp.float32)                       # (tm, E)

    z = f + x                                                     # residual
    mean = jnp.mean(z, axis=-1, keepdims=True)
    var = jnp.mean((z - mean) ** 2, axis=-1, keepdims=True)
    y = (z - mean) * jax.lax.rsqrt(var + eps)
    y = y * g_ref[...].astype(jnp.float32) + beta_ref[...].astype(jnp.float32)
    o_ref[...] = y.astype(o_ref.dtype)


# ----------------------------- wrappers --------------------------------------

def _row_tile(M, cap=256):
    """Largest multiple-of-8 tile dividing M and <= cap; prefer >=2 grid programs."""
    divisors = [t for t in range(8, min(cap, M) + 1, 8) if M % t == 0]
    if not divisors:
        return M
    multi = [t for t in divisors if M // t >= 2]
    return max(multi) if multi else max(divisors)


def attention_block(x, add_mask, p, n_heads, eps=1e-5):
    N, S, E = x.shape
    scale = E / 2.0  # literal `embedding_dim ** 1 / 2` from the reference module
    kern = functools.partial(_attn_block_kernel, n_heads=n_heads, scale=scale, eps=eps)
    return pl.pallas_call(
        kern,
        out_shape=jax.ShapeDtypeStruct((N, S, E), x.dtype),
        grid=(N,),
        in_specs=[
            pl.BlockSpec((1, S, E), lambda b: (b, 0, 0)),          # x
            pl.BlockSpec((E, 4 * E), lambda b: (0, 0)),            # fused Wq|Wk|Wv|Wr
            pl.BlockSpec((1, 4 * E), lambda b: (0, 0)),            # fused biases
            pl.BlockSpec((1, S, S), lambda b: (b, 0, 0)),          # additive mask
            pl.BlockSpec((E, E), lambda b: (0, 0)),                # Wo
            pl.BlockSpec((1, E), lambda b: (0, 0)),                # bo
            pl.BlockSpec((1, E), lambda b: (0, 0)),                # ln1 gamma
            pl.BlockSpec((1, E), lambda b: (0, 0)),                # ln1 beta
        ],
        out_specs=pl.BlockSpec((1, S, E), lambda b: (b, 0, 0)),
        compiler_params=pltpu.CompilerParams(dimension_semantics=("parallel",)),
    )(x, p["wqkvr"], p["bqkvr"].reshape(1, 4 * E), add_mask,
      p["wo"], p["bo"].reshape(1, E),
      p["ln1_g"].reshape(1, E), p["ln1_b"].reshape(1, E))


def ffn_block(x2d, p, eps=1e-5):
    M, E = x2d.shape
    F4 = p["w1"].shape[1]
    tm = _row_tile(M)
    kern = functools.partial(_ffn_ln_kernel, eps=eps)
    return pl.pallas_call(
        kern,
        out_shape=jax.ShapeDtypeStruct((M, E), x2d.dtype),
        grid=(M // tm,),
        in_specs=[
            pl.BlockSpec((tm, E), lambda i: (i, 0)),               # x rows
            pl.BlockSpec((E, F4), lambda i: (0, 0)),               # W1
            pl.BlockSpec((1, F4), lambda i: (0, 0)),               # b1
            pl.BlockSpec((F4, E), lambda i: (0, 0)),               # W2
            pl.BlockSpec((1, E), lambda i: (0, 0)),                # b2
            pl.BlockSpec((1, E), lambda i: (0, 0)),                # ln2 gamma
            pl.BlockSpec((1, E), lambda i: (0, 0)),                # ln2 beta
        ],
        out_specs=pl.BlockSpec((tm, E), lambda i: (i, 0)),
        compiler_params=pltpu.CompilerParams(dimension_semantics=("parallel",)),
    )(x2d, p["w1"], p["b1"].reshape(1, F4), p["w2"], p["b2"].reshape(1, E),
      p["ln2_g"].reshape(1, E), p["ln2_b"].reshape(1, E))


# ----------------------------- model (glue in JAX) ---------------------------

def transformer_block_fwd(x, add_mask, p, n_heads):
    N, S, E = x.shape
    y = attention_block(x, add_mask, p, n_heads)       # attn + out-proj + residual + LN1
    out = ffn_block(y.reshape(N * S, E), p)            # FFN (4E kept in VMEM) + residual + LN2
    return out.reshape(N, S, E)


def encoder_fwd(tokens, mask, params, n_heads):
    N, S = tokens.shape
    emb = jnp.take(params["tok_emb"], tokens, axis=0)             # (N, S, E)
    pos_emb = jnp.take(params["pos_emb"], jnp.arange(S), axis=0)  # (S, E)
    out = emb + pos_emb[None, :, :]                               # dropout = identity (eval)
    # Additive mask precomputed ONCE (f32, 0 / -1e20), reused by every block & head.
    add_mask = jnp.where(mask[:, 0] == 0, jnp.float32(-1e20), jnp.float32(0.0))
    for blk in params["blocks"]:
        out = transformer_block_fwd(out, add_mask, blk, n_heads)
    return out


# ----------------------------- deterministic init ----------------------------

def _init_linear(key, fan_in, fan_out):
    k1, k2 = jax.random.split(key)
    bound = 1.0 / (fan_in ** 0.5)
    w = jax.random.uniform(k1, (fan_in, fan_out), jnp.float32, -bound, bound)
    b = jax.random.uniform(k2, (fan_out,), jnp.float32, -bound, bound)
    return w, b


def init_params(key, vocab_size, E, num_blocks, max_len):
    keys = jax.random.split(key, 2 + num_blocks)
    params = {
        "tok_emb": jax.random.normal(keys[0], (vocab_size, E), jnp.float32),
        "pos_emb": jax.random.normal(keys[1], (max_len, E), jnp.float32),
        "blocks": [],
    }
    for i in range(num_blocks):
        bk = jax.random.split(keys[2 + i], 7)
        blk = {}
        wq, bq = _init_linear(bk[0], E, E)
        wk, bk_ = _init_linear(bk[1], E, E)
        wv, bv = _init_linear(bk[2], E, E)
        wr, br = _init_linear(bk[3], E, E)
        # Fused QKVR weight/bias: x is read once, one MXU call for all four projections.
        blk["wqkvr"] = jnp.concatenate([wq, wk, wv, wr], axis=1)   # (E, 4E)
        blk["bqkvr"] = jnp.concatenate([bq, bk_, bv, br], axis=0)  # (4E,)
        blk["wo"], blk["bo"] = _init_linear(bk[4], E, E)
        blk["w1"], blk["b1"] = _init_linear(bk[5], E, 4 * E)
        blk["w2"], blk["b2"] = _init_linear(bk[6], 4 * E, E)
        blk["ln1_g"] = jnp.ones((E,), jnp.float32)
        blk["ln1_b"] = jnp.zeros((E,), jnp.float32)
        blk["ln2_g"] = jnp.ones((E,), jnp.float32)
        blk["ln2_b"] = jnp.zeros((E,), jnp.float32)
        params["blocks"].append(blk)
    return params


# ----------------------------- main ------------------------------------------

if __name__ == "__main__":
    vocab_size = 50
    E = 32
    num_blocks = 2
    n_heads = 4
    max_len = 16
    N, S = 2, 8

    root = jax.random.PRNGKey(0)
    k_tok, k_par = jax.random.split(root)

    tokens = jax.random.randint(k_tok, (N, S), 0, vocab_size, dtype=jnp.int32)
    # causal-style mask (N, 1, S, S); positions with mask==0 get -1e20 before softmax
    mask = jnp.broadcast_to(
        jnp.tril(jnp.ones((S, S), jnp.int32))[None, None], (N, 1, S, S))

    params = init_params(k_par, vocab_size, E, num_blocks, max_len)

    out = encoder_fwd(tokens, mask, params, n_heads)
    out = jax.block_until_ready(out)
    assert out.shape == (N, S, E), out.shape
    assert jnp.all(jnp.isfinite(out))
    print("KERNEL_OK")
</pallas_src>

<mosaic_0001>
module attributes {stable_mosaic.version = 11 : i64} {
  func.func @_attn_block_kernel(%arg0: i32, %arg1: memref<1x8x32xf32, #tpu.memory_space<vmem>>, %arg2: memref<32x128xf32, #tpu.memory_space<vmem>>, %arg3: memref<1x128xf32, #tpu.memory_space<vmem>>, %arg4: memref<1x8x8xf32, #tpu.memory_space<vmem>>, %arg5: memref<32x32xf32, #tpu.memory_space<vmem>>, %arg6: memref<1x32xf32, #tpu.memory_space<vmem>>, %arg7: memref<1x32xf32, #tpu.memory_space<vmem>>, %arg8: memref<1x32xf32, #tpu.memory_space<vmem>>, %arg9: memref<1x8x32xf32, #tpu.memory_space<vmem>>) attributes {dimension_semantics = [#tpu.dimension_semantics<parallel>], iteration_bounds = array<i64: 2>, scalar_prefetch = 0 : i64, scratch_operands = 0 : i64, tpu.core_type = #tpu.core_type<tc>, window_params = [{transform_indices = @transform_0, window_bounds = array<i64: 1, 8, 32>}, {pipeline_mode = #tpu.pipeline_mode<synchronous>, transform_indices = @transform_1, window_bounds = array<i64: 32, 128>}, {pipeline_mode = #tpu.pipeline_mode<synchronous>, transform_indices = @transform_2, window_bounds = array<i64: 1, 128>}, {transform_indices = @transform_3, window_bounds = array<i64: 1, 8, 8>}, {pipeline_mode = #tpu.pipeline_mode<synchronous>, transform_indices = @transform_4, window_bounds = array<i64: 32, 32>}, {pipeline_mode = #tpu.pipeline_mode<synchronous>, transform_indices = @transform_5, window_bounds = array<i64: 1, 32>}, {pipeline_mode = #tpu.pipeline_mode<synchronous>, transform_indices = @transform_6, window_bounds = array<i64: 1, 32>}, {pipeline_mode = #tpu.pipeline_mode<synchronous>, transform_indices = @transform_7, window_bounds = array<i64: 1, 32>}, {transform_indices = @transform_8, window_bounds = array<i64: 1, 8, 32>}]} {
    %c0 = arith.constant 0 : index
    %c0_0 = arith.constant 0 : index
    %c0_1 = arith.constant 0 : index
    %0 = vector.load %arg1[%c0, %c0_0, %c0_1] : memref<1x8x32xf32, #tpu.memory_space<vmem>>, vector<1x8x32xf32>
    %1 = vector.shape_cast %0 : vector<1x8x32xf32> to vector<8x32xf32>
    %c0_2 = arith.constant 0 : index
    %c0_3 = arith.constant 0 : index
    %2 = vector.load %arg2[%c0_2, %c0_3] : memref<32x128xf32, #tpu.memory_space<vmem>>, vector<32x128xf32>
    %cst = arith.constant dense<0.000000e+00> : vector<8x128xf32>
    %3 = tpu.matmul %1, %2, %cst {dimension_numbers = #tpu.dot_dimension_numbers<[1], [0], [0], [1], [0, 0, 1, 1], [], []>} : vector<8x32xf32>, vector<32x128xf32>, vector<8x128xf32> -> vector<8x128xf32>
    %c0_4 = arith.constant 0 : index
    %c0_5 = arith.constant 0 : index
    %4 = vector.load %arg3[%c0_4, %c0_5] : memref<1x128xf32, #tpu.memory_space<vmem>>, vector<1x128xf32>
    %5 = vector.broadcast %4 : vector<1x128xf32> to vector<8x128xf32>
    %6 = arith.addf %3, %5 : vector<8x128xf32>
    %c0_6 = arith.constant 0 : index
    %c0_7 = arith.constant 0 : index
    %c0_8 = arith.constant 0 : index
    %7 = vector.load %arg4[%c0_6, %c0_7, %c0_8] : memref<1x8x8xf32, #tpu.memory_space<vmem>>, vector<1x8x8xf32>
    %8 = vector.shape_cast %7 : vector<1x8x8xf32> to vector<8x8xf32>
    %9 = vector.extract_strided_slice %6 {offsets = [0, 0], sizes = [8, 8], strides = [1, 1]} : vector<8x128xf32> to vector<8x8xf32>
    %10 = vector.extract_strided_slice %6 {offsets = [0, 32], sizes = [8, 8], strides = [1, 1]} : vector<8x128xf32> to vector<8x8xf32>
    %11 = vector.extract_strided_slice %6 {offsets = [0, 64], sizes = [8, 8], strides = [1, 1]} : vector<8x128xf32> to vector<8x8xf32>
    %12 = vector.extract_strided_slice %6 {offsets = [0, 96], sizes = [8, 8], strides = [1, 1]} : vector<8x128xf32> to vector<8x8xf32>
    %cst_9 = arith.constant dense<0.000000e+00> : vector<8x8xf32>
    %13 = tpu.matmul %9, %10, %cst_9 {dimension_numbers = #tpu.dot_dimension_numbers<[1], [1], [0], [0], [0, 0, 1, 0], [], []>} : vector<8x8xf32>, vector<8x8xf32>, vector<8x8xf32> -> vector<8x8xf32>
    %14 = arith.addf %13, %8 : vector<8x8xf32>
    %cst_10 = arith.constant 6.250000e-02 : f32
    %15 = vector.broadcast %cst_10 : f32 to vector<8x8xf32>
    %16 = arith.mulf %14, %15 : vector<8x8xf32>
    %cst_11 = arith.constant dense<0xFF800000> : vector<8xf32>
    %17 = vector.multi_reduction <maximumf>, %16, %cst_11 [1] : vector<8x8xf32> to vector<8xf32>
    %18 = vector.shape_cast %17 : vector<8xf32> to vector<8x1xf32>
    %19 = vector.broadcast %18 : vector<8x1xf32> to vector<8x8xf32>
    %20 = arith.subf %16, %19 : vector<8x8xf32>
    %21 = math.exp %20 : vector<8x8xf32>
    %cst_12 = arith.constant dense<0.000000e+00> : vector<8xf32>
    %22 = vector.multi_reduction <add>, %21, %cst_12 [1] : vector<8x8xf32> to vector<8xf32>
    %23 = vector.shape_cast %22 : vector<8xf32> to vector<8x1xf32>
    %24 = tpu.reciprocal %23 {approx = true} : vector<8x1xf32> -> vector<8x1xf32>
    %25 = vector.broadcast %24 : vector<8x1xf32> to vector<8x8xf32>
    %26 = arith.mulf %21, %25 : vector<8x8xf32>
    %cst_13 = arith.constant dense<0.000000e+00> : vector<8x8xf32>
    %27 = tpu.matmul %26, %11, %cst_13 {dimension_numbers = #tpu.dot_dimension_numbers<[1], [0], [0], [1], [0, 0, 1, 1], [], []>} : vector<8x8xf32>, vector<8x8xf32>, vector<8x8xf32> -> vector<8x8xf32>
    %28 = arith.mulf %27, %12 : vector<8x8xf32>
    %29 = vector.extract_strided_slice %6 {offsets = [0, 8], sizes = [8, 8], strides = [1, 1]} : vector<8x128xf32> to vector<8x8xf32>
    %30 = vector.extract_strided_slice %6 {offsets = [0, 40], sizes = [8, 8], strides = [1, 1]} : vector<8x128xf32> to vector<8x8xf32>
    %31 = vector.extract_strided_slice %6 {offsets = [0, 72], sizes = [8, 8], strides = [1, 1]} : vector<8x128xf32> to vector<8x8xf32>
    %32 = vector.extract_strided_slice %6 {offsets = [0, 104], sizes = [8, 8], strides = [1, 1]} : vector<8x128xf32> to vector<8x8xf32>
    %cst_14 = arith.constant dense<0.000000e+00> : vector<8x8xf32>
    %33 = tpu.matmul %29, %30, %cst_14 {dimension_numbers = #tpu.dot_dimension_numbers<[1], [1], [0], [0], [0, 0, 1, 0], [], []>} : vector<8x8xf32>, vector<8x8xf32>, vector<8x8xf32> -> vector<8x8xf32>
    %34 = arith.addf %33, %8 : vector<8x8xf32>
    %cst_15 = arith.constant 6.250000e-02 : f32
    %35 = vector.broadcast %cst_15 : f32 to vector<8x8xf32>
    %36 = arith.mulf %34, %35 : vector<8x8xf32>
    %cst_16 = arith.constant dense<0xFF800000> : vector<8xf32>
    %37 = vector.multi_reduction <maximumf>, %36, %cst_16 [1] : vector<8x8xf32> to vector<8xf32>
    %38 = vector.shape_cast %37 : vector<8xf32> to vector<8x1xf32>
    %39 = vector.broadcast %38 : vector<8x1xf32> to vector<8x8xf32>
    %40 = arith.subf %36, %39 : vector<8x8xf32>
    %41 = math.exp %40 : vector<8x8xf32>
    %cst_17 = arith.constant dense<0.000000e+00> : vector<8xf32>
    %42 = vector.multi_reduction <add>, %41, %cst_17 [1] : vector<8x8xf32> to vector<8xf32>
    %43 = vector.shape_cast %42 : vector<8xf32> to vector<8x1xf32>
    %44 = tpu.reciprocal %43 {approx = true} : vector<8x1xf32> -> vector<8x1xf32>
    %45 = vector.broadcast %44 : vector<8x1xf32> to vector<8x8xf32>
    %46 = arith.mulf %41, %45 : vector<8x8xf32>
    %cst_18 = arith.constant dense<0.000000e+00> : vector<8x8xf32>
    %47 = tpu.matmul %46, %31, %cst_18 {dimension_numbers = #tpu.dot_dimension_numbers<[1], [0], [0], [1], [0, 0, 1, 1], [], []>} : vector<8x8xf32>, vector<8x8xf32>, vector<8x8xf32> -> vector<8x8xf32>
    %48 = arith.mulf %47, %32 : vector<8x8xf32>
    %49 = vector.extract_strided_slice %6 {offsets = [0, 16], sizes = [8, 8], strides = [1, 1]} : vector<8x128xf32> to vector<8x8xf32>
    %50 = vector.extract_strided_slice %6 {offsets = [0, 48], sizes = [8, 8], strides = [1, 1]} : vector<8x128xf32> to vector<8x8xf32>
    %51 = vector.extract_strided_slice %6 {offsets = [0, 80], sizes = [8, 8], strides = [1, 1]} : vector<8x128xf32> to vector<8x8xf32>
    %52 = vector.extract_strided_slice %6 {offsets = [0, 112], sizes = [8, 8], strides = [1, 1]} : vector<8x128xf32> to vector<8x8xf32>
    %cst_19 = arith.constant dense<0.000000e+00> : vector<8x8xf32>
    %53 = tpu.matmul %49, %50, %cst_19 {dimension_numbers = #tpu.dot_dimension_numbers<[1], [1], [0], [0], [0, 0, 1, 0], [], []>} : vector<8x8xf32>, vector<8x8xf32>, vector<8x8xf32> -> vector<8x8xf32>
    %54 = arith.addf %53, %8 : vector<8x8xf32>
    %cst_20 = arith.constant 6.250000e-02 : f32
    %55 = vector.broadcast %cst_20 : f32 to vector<8x8xf32>
    %56 = arith.mulf %54, %55 : vector<8x8xf32>
    %cst_21 = arith.constant dense<0xFF800000> : vector<8xf32>
    %57 = vector.multi_reduction <maximumf>, %56, %cst_21 [1] : vector<8x8xf32> to vector<8xf32>
    %58 = vector.shape_cast %57 : vector<8xf32> to vector<8x1xf32>
    %59 = vector.broadcast %58 : vector<8x1xf32> to vector<8x8xf32>
    %60 = arith.subf %56, %59 : vector<8x8xf32>
    %61 = math.exp %60 : vector<8x8xf32>
    %cst_22 = arith.constant dense<0.000000e+00> : vector<8xf32>
    %62 = vector.multi_reduction <add>, %61, %cst_22 [1] : vector<8x8xf32> to vector<8xf32>
    %63 = vector.shape_cast %62 : vector<8xf32> to vector<8x1xf32>
    %64 = tpu.reciprocal %63 {approx = true} : vector<8x1xf32> -> vector<8x1xf32>
    %65 = vector.broadcast %64 : vector<8x1xf32> to vector<8x8xf32>
    %66 = arith.mulf %61, %65 : vector<8x8xf32>
    %cst_23 = arith.constant dense<0.000000e+00> : vector<8x8xf32>
    %67 = tpu.matmul %66, %51, %cst_23 {dimension_numbers = #tpu.dot_dimension_numbers<[1], [0], [0], [1], [0, 0, 1, 1], [], []>} : vector<8x8xf32>, vector<8x8xf32>, vector<8x8xf32> -> vector<8x8xf32>
    %68 = arith.mulf %67, %52 : vector<8x8xf32>
    %69 = vector.extract_strided_slice %6 {offsets = [0, 24], sizes = [8, 8], strides = [1, 1]} : vector<8x128xf32> to vector<8x8xf32>
    %70 = vector.extract_strided_slice %6 {offsets = [0, 56], sizes = [8, 8], strides = [1, 1]} : vector<8x128xf32> to vector<8x8xf32>
    %71 = vector.extract_strided_slice %6 {offsets = [0, 88], sizes = [8, 8], strides = [1, 1]} : vector<8x128xf32> to vector<8x8xf32>
    %72 = vector.extract_strided_slice %6 {offsets = [0, 120], sizes = [8, 8], strides = [1, 1]} : vector<8x128xf32> to vector<8x8xf32>
    %cst_24 = arith.constant dense<0.000000e+00> : vector<8x8xf32>
    %73 = tpu.matmul %69, %70, %cst_24 {dimension_numbers = #tpu.dot_dimension_numbers<[1], [1], [0], [0], [0, 0, 1, 0], [], []>} : vector<8x8xf32>, vector<8x8xf32>, vector<8x8xf32> -> vector<8x8xf32>
    %74 = arith.addf %73, %8 : vector<8x8xf32>
    %cst_25 = arith.constant 6.250000e-02 : f32
    %75 = vector.broadcast %cst_25 : f32 to vector<8x8xf32>
    %76 = arith.mulf %74, %75 : vector<8x8xf32>
    %cst_26 = arith.constant dense<0xFF800000> : vector<8xf32>
    %77 = vector.multi_reduction <maximumf>, %76, %cst_26 [1] : vector<8x8xf32> to vector<8xf32>
    %78 = vector.shape_cast %77 : vector<8xf32> to vector<8x1xf32>
    %79 = vector.broadcast %78 : vector<8x1xf32> to vector<8x8xf32>
    %80 = arith.subf %76, %79 : vector<8x8xf32>
    %81 = math.exp %80 : vector<8x8xf32>
    %cst_27 = arith.constant dense<0.000000e+00> : vector<8xf32>
    %82 = vector.multi_reduction <add>, %81, %cst_27 [1] : vector<8x8xf32> to vector<8xf32>
    %83 = vector.shape_cast %82 : vector<8xf32> to vector<8x1xf32>
    %84 = tpu.reciprocal %83 {approx = true} : vector<8x1xf32> -> vector<8x1xf32>
    %85 = vector.broadcast %84 : vector<8x1xf32> to vector<8x8xf32>
    %86 = arith.mulf %81, %85 : vector<8x8xf32>
    %cst_28 = arith.constant dense<0.000000e+00> : vector<8x8xf32>
    %87 = tpu.matmul %86, %71, %cst_28 {dimension_numbers = #tpu.dot_dimension_numbers<[1], [0], [0], [1], [0, 0, 1, 1], [], []>} : vector<8x8xf32>, vector<8x8xf32>, vector<8x8xf32> -> vector<8x8xf32>
    %88 = arith.mulf %87, %72 : vector<8x8xf32>
    %89 = tpu.concatenate %28, %48, %68, %88 in 1 : vector<8x8xf32>, vector<8x8xf32>, vector<8x8xf32>, vector<8x8xf32> -> vector<8x32xf32>
    %c0_29 = arith.constant 0 : index
    %c0_30 = arith.constant 0 : index
    %90 = vector.load %arg5[%c0_29, %c0_30] : memref<32x32xf32, #tpu.memory_space<vmem>>, vector<32x32xf32>
    %cst_31 = arith.constant dense<0.000000e+00> : vector<8x32xf32>
    %91 = tpu.matmul %89, %90, %cst_31 {dimension_numbers = #tpu.dot_dimension_numbers<[1], [0], [0], [1], [0, 0, 1, 1], [], []>} : vector<8x32xf32>, vector<32x32xf32>, vector<8x32xf32> -> vector<8x32xf32>
    %c0_32 = arith.constant 0 : index
    %c0_33 = arith.constant 0 : index
    %92 = vector.load %arg6[%c0_32, %c0_33] : memref<1x32xf32, #tpu.memory_space<vmem>>, vector<1x32xf32>
    %93 = vector.broadcast %92 : vector<1x32xf32> to vector<8x32xf32>
    %94 = arith.addf %91, %93 : vector<8x32xf32>
    %95 = arith.addf %94, %1 : vector<8x32xf32>
    %cst_34 = arith.constant dense<0.000000e+00> : vector<8xf32>
    %96 = vector.multi_reduction <add>, %95, %cst_34 [1] : vector<8x32xf32> to vector<8xf32>
    %97 = vector.shape_cast %96 : vector<8xf32> to vector<8x1xf32>
    %cst_35 = arith.constant 3.200000e+01 : f32
    %98 = vector.broadcast %cst_35 : f32 to vector<8x1xf32>
    %99 = arith.divf %97, %98 : vector<8x1xf32>
    %100 = vector.broadcast %99 : vector<8x1xf32> to vector<8x32xf32>
    %101 = arith.subf %95, %100 : vector<8x32xf32>
    %102 = arith.mulf %101, %101 : vector<8x32xf32>
    %cst_36 = arith.constant dense<0.000000e+00> : vector<8xf32>
    %103 = vector.multi_reduction <add>, %102, %cst_36 [1] : vector<8x32xf32> to vector<8xf32>
    %104 = vector.shape_cast %103 : vector<8xf32> to vector<8x1xf32>
    %cst_37 = arith.constant 3.200000e+01 : f32
    %105 = vector.broadcast %cst_37 : f32 to vector<8x1xf32>
    %106 = arith.divf %104, %105 : vector<8x1xf32>
    %107 = vector.broadcast %99 : vector<8x1xf32> to vector<8x32xf32>
    %108 = arith.subf %95, %107 : vector<8x32xf32>
    %cst_38 = arith.constant 9.99999974E-6 : f32
    %109 = vector.broadcast %cst_38 : f32 to vector<8x1xf32>
    %110 = arith.addf %106, %109 : vector<8x1xf32>
    %111 = math.rsqrt %110 : vector<8x1xf32>
    %112 = vector.broadcast %111 : vector<8x1xf32> to vector<8x32xf32>
    %113 = arith.mulf %108, %112 : vector<8x32xf32>
    %c0_39 = arith.constant 0 : index
    %c0_40 = arith.constant 0 : index
    %114 = vector.load %arg7[%c0_39, %c0_40] : memref<1x32xf32, #tpu.memory_space<vmem>>, vector<1x32xf32>
    %115 = vector.broadcast %114 : vector<1x32xf32> to vector<8x32xf32>
    %116 = arith.mulf %113, %115 : vector<8x32xf32>
    %c0_41 = arith.constant 0 : index
    %c0_42 = arith.constant 0 : index
    %117 = vector.load %arg8[%c0_41, %c0_42] : memref<1x32xf32, #tpu.memory_space<vmem>>, vector<1x32xf32>
    %118 = vector.broadcast %117 : vector<1x32xf32> to vector<8x32xf32>
    %119 = arith.addf %116, %118 : vector<8x32xf32>
    %120 = vector.shape_cast %119 : vector<8x32xf32> to vector<1x8x32xf32>
    %c0_43 = arith.constant 0 : index
    %c0_44 = arith.constant 0 : index
    %c0_45 = arith.constant 0 : index
    %121 = vector.load %arg9[%c0_43, %c0_44, %c0_45] : memref<1x8x32xf32, #tpu.memory_space<vmem>>, vector<1x8x32xf32>
    tpu.vector_store %arg9[%c0_43, %c0_44, %c0_45], %120 {strides = array<i32>} : memref<1x8x32xf32, #tpu.memory_space<vmem>>, vector<1x8x32xf32>,
    return
  }
  func.func @transform_0(%arg0: i32) -> (i32, i32, i32) {
    %c0_i32 = arith.constant 0 : i32
    %c0_i32_0 = arith.constant 0 : i32
    %c0_i32_1 = arith.constant 0 : i32
    return %arg0, %c0_i32, %c0_i32_0 : i32, i32, i32
  }
  func.func @transform_1(%arg0: i32) -> (i32, i32) {
    %c0_i32 = arith.constant 0 : i32
    %c0_i32_0 = arith.constant 0 : i32
    %c0_i32_1 = arith.constant 0 : i32
    return %c0_i32, %c0_i32_0 : i32, i32
  }
  func.func @transform_2(%arg0: i32) -> (i32, i32) {
    %c0_i32 = arith.constant 0 : i32
    %c0_i32_0 = arith.constant 0 : i32
    %c0_i32_1 = arith.constant 0 : i32
    return %c0_i32, %c0_i32_0 : i32, i32
  }
  func.func @transform_3(%arg0: i32) -> (i32, i32, i32) {
    %c0_i32 = arith.constant 0 : i32
    %c0_i32_0 = arith.constant 0 : i32
    %c0_i32_1 = arith.constant 0 : i32
    return %arg0, %c0_i32, %c0_i32_0 : i32, i32, i32
  }
  func.func @transform_4(%arg0: i32) -> (i32, i32) {
    %c0_i32 = arith.constant 0 : i32
    %c0_i32_0 = arith.constant 0 : i32
    %c0_i32_1 = arith.constant 0 : i32
    return %c0_i32, %c0_i32_0 : i32, i32
  }
  func.func @transform_5(%arg0: i32) -> (i32, i32) {
    %c0_i32 = arith.constant 0 : i32
    %c0_i32_0 = arith.constant 0 : i32
    %c0_i32_1 = arith.constant 0 : i32
    return %c0_i32, %c0_i32_0 : i32, i32
  }
  func.func @transform_6(%arg0: i32) -> (i32, i32) {
    %c0_i32 = arith.constant 0 : i32
    %c0_i32_0 = arith.constant 0 : i32
    %c0_i32_1 = arith.constant 0 : i32
    return %c0_i32, %c0_i32_0 : i32, i32
  }
  func.func @transform_7(%arg0: i32) -> (i32, i32) {
    %c0_i32 = arith.constant 0 : i32
    %c0_i32_0 = arith.constant 0 : i32
    %c0_i32_1 = arith.constant 0 : i32
    return %c0_i32, %c0_i32_0 : i32, i32
  }
  func.func @transform_8(%arg0: i32) -> (i32, i32, i32) {
    %c0_i32 = arith.constant 0 : i32
    %c0_i32_0 = arith.constant 0 : i32
    %c0_i32_1 = arith.constant 0 : i32
    return %arg0, %c0_i32, %c0_i32_0 : i32, i32, i32
  }
}

</mosaic_0001>

<llo_original>
// kernel: tpu_custom_call.1
$region0: #{tpu_custom_call.1}
  #allocation0 [shape = 'u32[]', space=smem, size = 0x4, offset = 0x4, fixed_abs, tag = 'smem constant byte address 0x4 - core index']
  #allocation1 [shape = 'u32[144,128]{1,0:T(1,128)}', space=vmem, size = 0x12000, scoped, tag = 'internal scratch']
  %s0 = inlined_call_operand.hbm [shape: f32[2,8,32], index: 0, kind: input, shape index: {}]
  %s1 = inlined_call_operand.hbm [shape: f32[32,128], index: 1, kind: input, shape index: {}]
  %s2 = inlined_call_operand.vmem [shape: f32[1,128], index: 2, kind: input, shape index: {}]
  %s3 = inlined_call_operand.hbm [shape: f32[2,8,8], index: 3, kind: input, shape index: {}]
  %s4 = inlined_call_operand.hbm [shape: f32[32,32], index: 4, kind: input, shape index: {}]
  %s5 = inlined_call_operand.vmem [shape: f32[1,32], index: 5, kind: input, shape index: {}]
  %s6 = inlined_call_operand.vmem [shape: f32[1,32], index: 6, kind: input, shape index: {}]
  %s7 = inlined_call_operand.vmem [shape: f32[1,32], index: 7, kind: input, shape index: {}]
  %s8 = inlined_call_operand.hbm [shape: f32[2,8,32], index: 8, kind: output, shape index: {}]
  %s9 = sld [smem:[#allocation0]]
  $region81: #{tpu_custom_call.1} parent=0
    _
  %s11 = ssub.s32 1, %s9
  %s12 = scalar_select 0, %s11, %s9
  $region1: #{tpu_custom_call.1} parent=0
    #allocation2 [shape = 'u8[8192]{0}', space=vmem, size = 0x2000, scoped, tag = 'input window, operand 0']
    #allocation3 [shape = 's32[2]{0}', space=sflag, size = 0x8, scoped, tag = 'scoped memory for tpu_custom_call.1']
    #allocation4 [shape = 's32[2]{0}', space=sflag, size = 0x8, scoped, tag = 'scoped memory for tpu_custom_call.1']
    #allocation5 [shape = 'u8[16384]{0}', space=vmem, size = 0x4000, scoped, tag = 'input window, operand 1, single buffered']
    #allocation6 [shape = 's32[1]{0}', space=sflag, size = 0x4, scoped, tag = 'scoped memory for tpu_custom_call.1']
    #allocation7 [shape = 'u8[8192]{0}', space=vmem, size = 0x2000, scoped, tag = 'input window, operand 3']
    #allocation8 [shape = 'u8[16384]{0}', space=vmem, size = 0x4000, scoped, tag = 'input window, operand 4, single buffered']
    #allocation9 [shape = 'u8[8192]{0}', space=vmem, size = 0x2000, scoped, tag = 'output window, operand 0']
    %13 = vsyncpa [#allocation3], 0
    %s14 = scalar_lea.sflag [#allocation3], 1
    %15 = vsyncpa %s14, 0
    %16 = vsyncpa [#allocation6], 0
    %17 = vsyncpa [#allocation4], 0
    %s18 = scalar_lea.sflag [#allocation4], 1
    %19 = vsyncpa %s18, 0
    loop: start=0, step=1, limit=4
    $region2: #{tpu_custom_call.1} parent=1 // loop_pre_header
      _
    $region3: #{tpu_custom_call.1} parent=1 // loop_header
      %s21 = sphi 0, %s25
      %p22 = scmp.ge.s32.totalorder %s21, 4
      %s31 = sphi 0, %s33
      %s34 = sphi 0, %s31
      %s35 = sphi 0, %s34
      %s51 = sphi 0, %s35
      %s55 = sphi 0, %s55
      %s57 = sphi 0, %s55
      %s58 = sphi 0, %s57
      %s72 = sphi 0, %s58
      %s76 = sphi 0, %s76
      %s78 = sphi 0, %s76
      %s79 = sphi 0, %s78
      %s93 = sphi 0, %s79
      %s99 = sphi 0, %s101
      %s102 = sphi 0, %s99
      %s103 = sphi 0, %s102
      %s119 = sphi 0, %s103
      %s123 = sphi 0, %s123
      %s125 = sphi 0, %s123
      %s126 = sphi 0, %s125
      %s140 = sphi 0, %s126
      %s144 = sphi 0, %s144
      %s146 = sphi 0, %s144
      %s147 = sphi 0, %s146
      %s161 = sphi 0, %s147
      %s165 = sphi 0, %s165
      %s167 = sphi 0, %s165
      %s168 = sphi 0, %s167
      %s182 = sphi 0, %s168
      %s186 = sphi 0, %s186
      %s188 = sphi 0, %s186
      %s189 = sphi 0, %s188
      %s203 = sphi 0, %s189
      %s209 = sphi 0, %s211
      %s212 = sphi 0, %s209
      %s213 = sphi 0, %s212
      %s229 = sphi 0, %s213
    $region4: #{tpu_custom_call.1} parent=1 // loop_header_branch
      %24 = sbr.rel (%p22) target = $region8
    $region5: #{tpu_custom_call.1} parent=1 // loop_body
      %s26 = ssub.s32 %s21, 1
      %s27 = ssub.s32 %s21, 2
      %s28 = sadd.s32 %s21, 1
      %s29 = ssub.s32 %s21, %s28
      %p30 = scmp.eq.s32.totalorder %s29, 0
      %s32 = sadd.s32 %s31, 1
      %s33 = scalar_select %p30, %s31, %s32
      %p36 = pneg %p30
      %p37 = scmp.eq.s32.totalorder %s21, 1
      %p38 = por %p36, %p37
      %p39 = scmp.ne.s32.totalorder %s31, %s34
      %p40 = scmp.eq.s32.totalorder %s21, 0
      %p41 = por %p39, %p40
      %p42 = scmp.ne.s32.totalorder %s31, %s34
      %p43 = scmp.eq.s32.totalorder %s26, 1
      %p44 = por %p42, %p43
      %p45 = scmp.ne.s32.totalorder %s34, %s35
      %p46 = scmp.eq.s32.totalorder %s26, 0
      %p47 = por %p45, %p46
      %p48 = scmp.ne.s32.totalorder %s34, %s35
      %p49 = scmp.eq.s32.totalorder %s27, 1
      %p50 = por %p48, %p49
      %p52 = scmp.ne.s32.totalorder %s35, %s51
      %p53 = scmp.eq.s32.totalorder %s27, 0
      %p54 = por %p52, %p53
      %s56 = sadd.s32 %s55, 1
      %p59 = scmp.eq.s32.totalorder %s21, 1
      %p60 = scmp.ne.s32.totalorder %s55, %s57
      %p61 = scmp.eq.s32.totalorder %s21, 0
      %p62 = por %p60, %p61
      %p63 = scmp.ne.s32.totalorder %s55, %s57
      %p64 = scmp.eq.s32.totalorder %s26, 1
      %p65 = por %p63, %p64
      %p66 = scmp.ne.s32.totalorder %s57, %s58
      %p67 = scmp.eq.s32.totalorder %s26, 0
      %p68 = por %p66, %p67
      %p69 = scmp.ne.s32.totalorder %s57, %s58
      %p70 = scmp.eq.s32.totalorder %s27, 1
      %p71 = por %p69, %p70
      %p73 = scmp.ne.s32.totalorder %s58, %s72
      %p74 = scmp.eq.s32.totalorder %s27, 0
      %p75 = por %p73, %p74
      %s77 = sadd.s32 %s76, 1
      %p80 = scmp.eq.s32.totalorder %s21, 1
      %p81 = scmp.ne.s32.totalorder %s76, %s78
      %p82 = scmp.eq.s32.totalorder %s21, 0
      %p83 = por %p81, %p82
      %p84 = scmp.ne.s32.totalorder %s76, %s78
      %p85 = scmp.eq.s32.totalorder %s26, 1
      %p86 = por %p84, %p85
      %p87 = scmp.ne.s32.totalorder %s78, %s79
      %p88 = scmp.eq.s32.totalorder %s26, 0
      %p89 = por %p87, %p88
      %p90 = scmp.ne.s32.totalorder %s78, %s79
      %p91 = scmp.eq.s32.totalorder %s27, 1
      %p92 = por %p90, %p91
      %p94 = scmp.ne.s32.totalorder %s79, %s93
      %p95 = scmp.eq.s32.totalorder %s27, 0
      %p96 = por %p94, %p95
      %s97 = ssub.s32 %s21, %s28
      %p98 = scmp.eq.s32.totalorder %s97, 0
      %s100 = sadd.s32 %s99, 1
      %s101 = scalar_select %p98, %s99, %s100
      %p104 = pneg %p98
      %p105 = scmp.eq.s32.totalorder %s21, 1
      %p106 = por %p104, %p105
      %p107 = scmp.ne.s32.totalorder %s99, %s102
      %p108 = scmp.eq.s32.totalorder %s21, 0
      %p109 = por %p107, %p108
      %p110 = scmp.ne.s32.totalorder %s99, %s102
      %p111 = scmp.eq.s32.totalorder %s26, 1
      %p112 = por %p110, %p111
      %p113 = scmp.ne.s32.totalorder %s102, %s103
      %p114 = scmp.eq.s32.totalorder %s26, 0
      %p115 = por %p113, %p114
      %p116 = scmp.ne.s32.totalorder %s102, %s103
      %p117 = scmp.eq.s32.totalorder %s27, 1
      %p118 = por %p116, %p117
      %p120 = scmp.ne.s32.totalorder %s103, %s119
      %p121 = scmp.eq.s32.totalorder %s27, 0
      %p122 = por %p120, %p121
      %s124 = sadd.s32 %s123, 1
      %p127 = scmp.eq.s32.totalorder %s21, 1
      %p128 = scmp.ne.s32.totalorder %s123, %s125
      %p129 = scmp.eq.s32.totalorder %s21, 0
      %p130 = por %p128, %p129
      %p131 = scmp.ne.s32.totalorder %s123, %s125
      %p132 = scmp.eq.s32.totalorder %s26, 1
      %p133 = por %p131, %p132
      %p134 = scmp.ne.s32.totalorder %s125, %s126
      %p135 = scmp.eq.s32.totalorder %s26, 0
      %p136 = por %p134, %p135
      %p137 = scmp.ne.s32.totalorder %s125, %s126
      %p138 = scmp.eq.s32.totalorder %s27, 1
      %p139 = por %p137, %p138
      %p141 = scmp.ne.s32.totalorder %s126, %s140
      %p142 = scmp.eq.s32.totalorder %s27, 0
      %p143 = por %p141, %p142
      %s145 = sadd.s32 %s144, 1
      %p148 = scmp.eq.s32.totalorder %s21, 1
      %p149 = scmp.ne.s32.totalorder %s144, %s146
      %p150 = scmp.eq.s32.totalorder %s21, 0
      %p151 = por %p149, %p150
      %p152 = scmp.ne.s32.totalorder %s144, %s146
      %p153 = scmp.eq.s32.totalorder %s26, 1
      %p154 = por %p152, %p153
      %p155 = scmp.ne.s32.totalorder %s146, %s147
      %p156 = scmp.eq.s32.totalorder %s26, 0
      %p157 = por %p155, %p156
      %p158 = scmp.ne.s32.totalorder %s146, %s147
      %p159 = scmp.eq.s32.totalorder %s27, 1
      %p160 = por %p158, %p159
      %p162 = scmp.ne.s32.totalorder %s147, %s161
      %p163 = scmp.eq.s32.totalorder %s27, 0
      %p164 = por %p162, %p163
      %s166 = sadd.s32 %s165, 1
      %p169 = scmp.eq.s32.totalorder %s21, 1
      %p170 = scmp.ne.s32.totalorder %s165, %s167
      %p171 = scmp.eq.s32.totalorder %s21, 0
      %p172 = por %p170, %p171
      %p173 = scmp.ne.s32.totalorder %s165, %s167
      %p174 = scmp.eq.s32.totalorder %s26, 1
      %p175 = por %p173, %p174
      %p176 = scmp.ne.s32.totalorder %s167, %s168
      %p177 = scmp.eq.s32.totalorder %s26, 0
      %p178 = por %p176, %p177
      %p179 = scmp.ne.s32.totalorder %s167, %s168
      %p180 = scmp.eq.s32.totalorder %s27, 1
      %p181 = por %p179, %p180
      %p183 = scmp.ne.s32.totalorder %s168, %s182
      %p184 = scmp.eq.s32.totalorder %s27, 0
      %p185 = por %p183, %p184
      %s187 = sadd.s32 %s186, 1
      %p190 = scmp.eq.s32.totalorder %s21, 1
      %p191 = scmp.ne.s32.totalorder %s186, %s188
      %p192 = scmp.eq.s32.totalorder %s21, 0
      %p193 = por %p191, %p192
      %p194 = scmp.ne.s32.totalorder %s186, %s188
      %p195 = scmp.eq.s32.totalorder %s26, 1
      %p196 = por %p194, %p195
      %p197 = scmp.ne.s32.totalorder %s188, %s189
      %p198 = scmp.eq.s32.totalorder %s26, 0
      %p199 = por %p197, %p198
      %p200 = scmp.ne.s32.totalorder %s188, %s189
      %p201 = scmp.eq.s32.totalorder %s27, 1
      %p202 = por %p200, %p201
      %p204 = scmp.ne.s32.totalorder %s189, %s203
      %p205 = scmp.eq.s32.totalorder %s27, 0
      %p206 = por %p204, %p205
      %s207 = ssub.s32 %s21, %s28
      %p208 = scmp.eq.s32.totalorder %s207, 0
      %s210 = sadd.s32 %s209, 1
      %s211 = scalar_select %p208, %s209, %s210
      %p214 = pneg %p208
      %p215 = scmp.eq.s32.totalorder %s21, 1
      %p216 = por %p214, %p215
      %p217 = scmp.ne.s32.totalorder %s209, %s212
      %p218 = scmp.eq.s32.totalorder %s21, 0
      %p219 = por %p217, %p218
      %p220 = scmp.ne.s32.totalorder %s209, %s212
      %p221 = scmp.eq.s32.totalorder %s26, 1
      %p222 = por %p220, %p221
      %p223 = scmp.ne.s32.totalorder %s212, %s213
      %p224 = scmp.eq.s32.totalorder %s26, 0
      %p225 = por %p223, %p224
      %p226 = scmp.ne.s32.totalorder %s212, %s213
      %p227 = scmp.eq.s32.totalorder %s27, 1
      %p228 = por %p226, %p227
      %p230 = scmp.ne.s32.totalorder %s213, %s229
      %p231 = scmp.eq.s32.totalorder %s27, 0
      %p232 = por %p230, %p231
      %p233 = scmp.le.s32.totalorder 1, %s21
      %p234 = scmp.lt.s32.totalorder %s21, 3
      %p235 = pnand %p233, %p234
      %p236 = pneg %p235
      // Predicated region
      $region9: #{tpu_custom_call.1} parent=5 // pred_check
        _
      $region10: #{tpu_custom_call.1} parent=5 // pred_check_branch
        %238 = sbr.rel (%p235) target = $region12
      $region11: #{tpu_custom_call.1} parent=5 // pred_region
        %s239 = ssub.s32 %s21, 1
        // Predicated region
        $region13: #{tpu_custom_call.1} parent=11 // pred_check
          %p240 = pneg %p68
        $region14: #{tpu_custom_call.1} parent=11 // pred_check_branch
          %242 = sbr.rel (%p240) target = $region16
        $region15: #{tpu_custom_call.1} parent=11 // pred_region
          %s244 = ssub.s32 512, 512
          %245 = vsyncadd [#allocation6], %s244
          %s246 = sshll.u32 [#allocation5], 4
          %s247 = int_to_ptr.vmem [resolvable:$true] %s246
          %252 = dma.hbm_to_vmem [thread:$0]  %s1, 512, %s247, [#allocation6], 128, 128, 8
        $region16: #{tpu_custom_call.1} parent=11 // pred_fallthru
          _
        // Predicated region
        $region17: #{tpu_custom_call.1} parent=11 // pred_check
          %p253 = pneg %p89
        $region18: #{tpu_custom_call.1} parent=11 // pred_check_branch
          %255 = sbr.rel (%p253) target = $region20
        $region19: #{tpu_custom_call.1} parent=11 // pred_region
          _
        $region20: #{tpu_custom_call.1} parent=11 // pred_fallthru
          _
        // Predicated region
        $region21: #{tpu_custom_call.1} parent=11 // pred_check
          %p256 = pneg %p136
        $region22: #{tpu_custom_call.1} parent=11 // pred_check_branch
          %258 = sbr.rel (%p256) target = $region24
        $region23: #{tpu_custom_call.1} parent=11 // pred_region
          %s260 = ssub.s32 512, 512
          %261 = vsyncadd [#allocation6], %s260
          %s262 = sshll.u32 [#allocation8], 4
          %s263 = int_to_ptr.vmem [resolvable:$true] %s262
          %268 = dma.hbm_to_vmem [thread:$0]  %s4, 512, %s263, [#allocation6], 128, 128, 8
        $region24: #{tpu_custom_call.1} parent=11 // pred_fallthru
          _
        // Predicated region
        $region25: #{tpu_custom_call.1} parent=11 // pred_check
          %p269 = pneg %p157
        $region26: #{tpu_custom_call.1} parent=11 // pred_check_branch
          %271 = sbr.rel (%p269) target = $region28
        $region27: #{tpu_custom_call.1} parent=11 // pred_region
          _
        $region28: #{tpu_custom_call.1} parent=11 // pred_fallthru
          _
        // Predicated region
        $region29: #{tpu_custom_call.1} parent=11 // pred_check
          %p272 = pneg %p178
        $region30: #{tpu_custom_call.1} parent=11 // pred_check_branch
          %274 = sbr.rel (%p272) target = $region32
        $region31: #{tpu_custom_call.1} parent=11 // pred_region
          _
        $region32: #{tpu_custom_call.1} parent=11 // pred_fallthru
          _
        // Predicated region
        $region33: #{tpu_custom_call.1} parent=11 // pred_check
          %p275 = pneg %p199
        $region34: #{tpu_custom_call.1} parent=11 // pred_check_branch
          %277 = sbr.rel (%p275) target = $region36
        $region35: #{tpu_custom_call.1} parent=11 // pred_region
          _
        $region36: #{tpu_custom_call.1} parent=11 // pred_fallthru
          _
      $region12: #{tpu_custom_call.1} parent=5 // pred_fallthru
        _
      %p278 = scmp.lt.s32.totalorder %s21, 2
      // Predicated region
      $region37: #{tpu_custom_call.1} parent=5 // pred_check
        %p279 = pneg %p278
      $region38: #{tpu_custom_call.1} parent=5 // pred_check_branch
        %281 = sbr.rel (%p279) target = $region40
      $region39: #{tpu_custom_call.1} parent=5 // pred_region
        // Predicated region
        $region41: #{tpu_custom_call.1} parent=39 // pred_check
          %p282 = pneg %p41
        $region42: #{tpu_custom_call.1} parent=39 // pred_check_branch
          %284 = sbr.rel (%p282) target = $region44
        $region43: #{tpu_custom_call.1} parent=39 // pred_region
          %s285 = sand.u32 %s21, 1
          %s286 = scalar_lea.sflag [#allocation3], %s285
          %s287 = sand.u32 %s31, 1
          %s288 = smul.addr %s287, 8
          %s289 = scalar_lea.vmem [#allocation2], %s288
          %s291 = ssub.s32 128, 128
          %292 = vsyncadd %s286, %s291
          %s293 = smul.addr %s21, 128
          %s294 = scalar_lea.hbm %s0, %s293
          %s296 = sshll.u32 %s289, 4
          %s297 = int_to_ptr.vmem [resolvable:$true] %s296
          %299 = dma.hbm_to_vmem [thread:$0]  %s294, 128, %s297, %s286
        $region44: #{tpu_custom_call.1} parent=39 // pred_fallthru
          _
        // Predicated region
        $region45: #{tpu_custom_call.1} parent=39 // pred_check
          %p300 = pneg %p109
        $region46: #{tpu_custom_call.1} parent=39 // pred_check_branch
          %302 = sbr.rel (%p300) target = $region48
        $region47: #{tpu_custom_call.1} parent=39 // pred_region
          %s303 = sand.u32 %s21, 1
          %s304 = scalar_lea.sflag [#allocation3], %s303
          %s305 = sand.u32 %s99, 1
          %s306 = smul.addr %s305, 8
          %s307 = scalar_lea.vmem [#allocation7], %s306
          %s309 = ssub.s32 128, 128
          %310 = vsyncadd %s304, %s309
          %s311 = smul.addr %s21, 128
          %s312 = scalar_lea.hbm %s3, %s311
          %s314 = sshll.u32 %s307, 4
          %s315 = int_to_ptr.vmem [resolvable:$true] %s314
          %317 = dma.hbm_to_vmem [thread:$0]  %s312, 128, %s315, %s304
        $region48: #{tpu_custom_call.1} parent=39 // pred_fallthru
          _
      $region40: #{tpu_custom_call.1} parent=5 // pred_fallthru
        _
      %p318 = scmp.le.s32.totalorder 1, %s21
      %p319 = scmp.lt.s32.totalorder %s21, 3
      %p320 = pnand %p318, %p319
      %p321 = pneg %p320
      // Predicated region
      $region49: #{tpu_custom_call.1} parent=5 // pred_check
        _
      $region50: #{tpu_custom_call.1} parent=5 // pred_check_branch
        %323 = sbr.rel (%p320) target = $region52
      $region51: #{tpu_custom_call.1} parent=5 // pred_region
        %s324 = ssub.s32 %s21, 1
        %s325 = sand.u32 %s26, 1
        %s326 = scalar_lea.sflag [#allocation3], %s325
        %s327 = sand.u32 %s34, 1
        %s328 = smul.addr %s327, 8
        %s329 = scalar_lea.vmem [#allocation2], %s328
        // Predicated region
        $region53: #{tpu_custom_call.1} parent=51 // pred_check
          %p330 = pneg %p47
        $region54: #{tpu_custom_call.1} parent=51 // pred_check_branch
          %332 = sbr.rel (%p330) target = $region56
        $region55: #{tpu_custom_call.1} parent=51 // pred_region
          %333 = dma.done %s326, 128
        $region56: #{tpu_custom_call.1} parent=51 // pred_fallthru
          _
        // Predicated region
        $region57: #{tpu_custom_call.1} parent=51 // pred_check
          %p334 = pneg %p68
        $region58: #{tpu_custom_call.1} parent=51 // pred_check_branch
          %336 = sbr.rel (%p334) target = $region60
        $region59: #{tpu_custom_call.1} parent=51 // pred_region
          %337 = dma.done [#allocation6], 512
        $region60: #{tpu_custom_call.1} parent=51 // pred_fallthru
          _
        %s338 = sand.u32 %s26, 1
        %s339 = scalar_lea.sflag [#allocation3], %s338
        %s340 = sand.u32 %s102, 1
        %s341 = smul.addr %s340, 8
        %s342 = scalar_lea.vmem [#allocation7], %s341
        // Predicated region
        $region61: #{tpu_custom_call.1} parent=51 // pred_check
          %p343 = pneg %p115
        $region62: #{tpu_custom_call.1} parent=51 // pred_check_branch
          %345 = sbr.rel (%p343) target = $region64
        $region63: #{tpu_custom_call.1} parent=51 // pred_region
          %346 = dma.done %s339, 128
        $region64: #{tpu_custom_call.1} parent=51 // pred_fallthru
          _
        // Predicated region
        $region65: #{tpu_custom_call.1} parent=51 // pred_check
          %p347 = pneg %p136
        $region66: #{tpu_custom_call.1} parent=51 // pred_check_branch
          %349 = sbr.rel (%p347) target = $region68
        $region67: #{tpu_custom_call.1} parent=51 // pred_region
          %350 = dma.done [#allocation6], 512
        $region68: #{tpu_custom_call.1} parent=51 // pred_fallthru
          _
        %s351 = sand.u32 %s26, 1
        %s352 = scalar_lea.sflag [#allocation3], %s351
        %s353 = sand.u32 %s34, 1
        %s354 = smul.addr %s353, 8
        %s355 = scalar_lea.vmem [#allocation2], %s354
        %p356 = pneg %p47
        %p357 = pneg %p44
        %p358 = pneg %p68
        %p359 = pneg %p65
        %p360 = pneg %p89
        %p361 = pneg %p86
        %s362 = sand.u32 %s26, 1
        %s363 = scalar_lea.sflag [#allocation3], %s362
        %s364 = sand.u32 %s102, 1
        %s365 = smul.addr %s364, 8
        %s366 = scalar_lea.vmem [#allocation7], %s365
        %p367 = pneg %p115
        %p368 = pneg %p112
        %p369 = pneg %p136
        %p370 = pneg %p133
        %p371 = pneg %p157
        %p372 = pneg %p154
        %p373 = pneg %p178
        %p374 = pneg %p175
        %p375 = pneg %p199
        %p376 = pneg %p196
        %p377 = pneg %p225
        %p378 = pneg %p222
        %s379 = sand.u32 %s212, 1
        %s380 = scalar_lea.sflag [#allocation4], %s379
        %s381 = sand.u32 %s212, 1
        %s382 = smul.addr %s381, 8
        %s383 = scalar_lea.vmem [#allocation9], %s382
        %v384 = vld [vmem:[%s329] sm:$0xff]
        %v385 = vld [vmem:[#allocation5] sm:$0xff]
        %v386 = vld [vmem:[#allocation5 + $0x8] sm:$0xff]
        %v387 = vld [vmem:[#allocation5 + $0x10] sm:$0xff]
        %v388 = vld [vmem:[#allocation5 + $0x18] sm:$0xff]
        %v389 = vld [vmem:[%s2] sm:$0x1]
        %v391 = vlaneseq
        %v392 = vshrl.u32 %v391, 7
        %v393 = vsub.s32 0, %v392
        %v394 = vrot.slane %v389, %v393
        %vm396 = vcmask 261120
        %v398 = vsel %vm396, %v384, 0
        %400 = vmatprep.subr.mxu0 0.0
        %401 = vmatpush1.msra.mxu0 %v385
        %402 = vmatprep.subr.mxu0 0.0
        %403 = vmatpush1.msra.mxu0 %v386
        %404 = vmatprep.subr.mxu0 0.0
        %405 = vmatpush1.msra.mxu0 %v387
        %406 = vmatprep.subr.mxu0 0.0
        %407 = vmatpush1.msra.mxu0 %v388
        %408 = vmatprep.subr.mxu0 0.0
        %409 = vmatpush1.msra.mxu0 0.0
        %410 = vmatprep.subr.mxu0 0.0
        %411 = vmatpush1.msra.mxu0 0.0
        %412 = vmatprep.subr.mxu0 0.0
        %413 = vmatpush1.msra.mxu0 0.0
        %414 = vmatprep.subr.mxu0 0.0
        %415 = vmatpush1.msra.mxu0 0.0
        %416 = vmatprep.subr.mxu0 0.0
        %417 = vmatpush1.msra.mxu0 0.0
        %418 = vmatprep.subr.mxu0 0.0
        %419 = vmatpush1.msra.mxu0 0.0
        %420 = vmatprep.subr.mxu0 0.0
        %421 = vmatpush1.msra.mxu0 0.0
        %422 = vmatprep.subr.mxu0 0.0
        %423 = vmatpush1.msra.mxu0 0.0
        %424 = vmatprep.subr.mxu0 0.0
        %425 = vmatpush1.msra.mxu0 0.0
        %426 = vmatprep.subr.mxu0 0.0
        %427 = vmatpush1.msra.mxu0 0.0
        %428 = vmatprep.subr.mxu0 0.0
        %429 = vmatpush1.msra.mxu0 0.0
        %430 = vmatprep.subr.mxu0 0.0
        %431 = vmatpush1.msra.mxu0 0.0
        %432 = vmatprep.subr.mxu0 0.0
        %433 = vmatpush1.msra.mxu0 0.0
        %434 = vmatprep.subr.mxu0 0.0
        %435 = vmatpush1.msra.mxu0 0.0
        %436 = vmatprep.subr.mxu0 0.0
        %437 = vmatpush1.msra.mxu0 0.0
        %438 = vmatprep.subr.mxu0 0.0
        %439 = vmatpush1.msra.mxu0 0.0
        %440 = vmatprep.subr.mxu0 0.0
        %441 = vmatpush1.msra.mxu0 0.0
        %442 = vmatprep.subr.mxu0 0.0
        %443 = vmatpush1.msra.mxu0 0.0
        %444 = vmatprep.subr.mxu0 0.0
        %445 = vmatpush1.msra.mxu0 0.0
        %446 = vmatprep.subr.mxu0 0.0
        %447 = vmatpush1.msra.mxu0 0.0
        %448 = vmatprep.subr.mxu0 0.0
        %449 = vmatpush1.msra.mxu0 0.0
        %450 = vmatprep.subr.mxu0 0.0
        %451 = vmatpush1.msra.mxu0 0.0
        %452 = vmatprep.subr.mxu0 0.0
        %453 = vmatpush1.msra.mxu0 0.0
        %454 = vmatprep.subr.mxu0 0.0
        %455 = vmatpush1.msra.mxu0 0.0
        %456 = vmatprep.subr.mxu0 0.0
        %457 = vmatpush1.msra.mxu0 0.0
        %458 = vmatprep.subr.mxu0 0.0
        %459 = vmatpush1.msra.mxu0 0.0
        %460 = vmatprep.subr.mxu0 0.0
        %461 = vmatpush1.msra.mxu0 0.0
        %462 = vmatprep.subr.mxu0 0.0
        %463 = vmatpush1.msra.mxu0 0.0
        %464 = vmatprep.mubr.f32.mxu0 0.0
        %465 = vmatmul.mubr.f32.gmra.mrb[0].mxu0 %v398
        %v466 = vpop.f32.mrb[0].mxu0
        %v467 = vadd.f32 %v394, %v466
        %v468 = vpop.f32.mrb[0].mxu0
        %469 = vdwg.mxu0
        %v470 = vld [vmem:[%s342] sm:$0xff]
        %472 = vrot.lane.b32.xlu0 %v467, 96
        %v473 = vpop.permute.xlu0 %472
        %vm474 = vcmask 64512
        %v475 = vsel %vm474, %v467, 0
        %v477 = vsel %vm474, %v473, 0
        %479 = vmatprep.subr.mxu0 0.0
        %480 = vmatpush1.xpose.msra.mxu0 %v477
        %481 = vmatprep.subr.mxu0 0.0
        %482 = vmatpush1.xpose.msra.mxu0 0.0
        %483 = vmatprep.subr.mxu0 0.0
        %484 = vmatpush1.xpose.msra.mxu0 0.0
        %485 = vmatprep.subr.mxu0 0.0
        %486 = vmatpush1.xpose.msra.mxu0 0.0
        %487 = vmatprep.subr.mxu0 0.0
        %488 = vmatpush1.xpose.msra.mxu0 0.0
        %489 = vmatprep.subr.mxu0 0.0
        %490 = vmatpush1.xpose.msra.mxu0 0.0
        %491 = vmatprep.subr.mxu0 0.0
        %492 = vmatpush1.xpose.msra.mxu0 0.0
        %493 = vmatprep.subr.mxu0 0.0
        %494 = vmatpush1.xpose.msra.mxu0 0.0
        %495 = vmatprep.subr.mxu0 0.0
        %496 = vmatpush1.xpose.msra.mxu0 0.0
        %497 = vmatprep.subr.mxu0 0.0
        %498 = vmatpush1.xpose.msra.mxu0 0.0
        %499 = vmatprep.subr.mxu0 0.0
        %500 = vmatpush1.xpose.msra.mxu0 0.0
        %501 = vmatprep.subr.mxu0 0.0
        %502 = vmatpush1.xpose.msra.mxu0 0.0
        %503 = vmatprep.subr.mxu0 0.0
        %504 = vmatpush1.xpose.msra.mxu0 0.0
        %505 = vmatprep.subr.mxu0 0.0
        %506 = vmatpush1.xpose.msra.mxu0 0.0
        %507 = vmatprep.subr.mxu0 0.0
        %508 = vmatpush1.xpose.msra.mxu0 0.0
        %509 = vmatprep.subr.mxu0 0.0
        %510 = vmatpush1.xpose.msra.mxu0 0.0
        %511 = vmatprep.subr.mxu0 0.0
        %512 = vmatpush1.xpose.msra.mxu0 0.0
        %513 = vmatprep.subr.mxu0 0.0
        %514 = vmatpush1.xpose.msra.mxu0 0.0
        %515 = vmatprep.subr.mxu0 0.0
        %516 = vmatpush1.xpose.msra.mxu0 0.0
        %517 = vmatprep.subr.mxu0 0.0
        %518 = vmatpush1.xpose.msra.mxu0 0.0
        %519 = vmatprep.subr.mxu0 0.0
        %520 = vmatpush1.xpose.msra.mxu0 0.0
        %521 = vmatprep.subr.mxu0 0.0
        %522 = vmatpush1.xpose.msra.mxu0 0.0
        %523 = vmatprep.subr.mxu0 0.0
        %524 = vmatpush1.xpose.msra.mxu0 0.0
        %525 = vmatprep.subr.mxu0 0.0
        %526 = vmatpush1.xpose.msra.mxu0 0.0
        %527 = vmatprep.subr.mxu0 0.0
        %528 = vmatpush1.xpose.msra.mxu0 0.0
        %529 = vmatprep.subr.mxu0 0.0
        %530 = vmatpush1.xpose.msra.mxu0 0.0
        %531 = vmatprep.subr.mxu0 0.0
        %532 = vmatpush1.xpose.msra.mxu0 0.0
        %533 = vmatprep.subr.mxu0 0.0
        %534 = vmatpush1.xpose.msra.mxu0 0.0
        %535 = vmatprep.subr.mxu0 0.0
        %536 = vmatpush1.xpose.msra.mxu0 0.0
        %537 = vmatprep.subr.mxu0 0.0
        %538 = vmatpush1.xpose.msra.mxu0 0.0
        %539 = vmatprep.subr.mxu0 0.0
        %540 = vmatpush1.xpose.msra.mxu0 0.0
        %541 = vmatprep.subr.mxu0 0.0
        %542 = vmatpush1.xpose.msra.mxu0 0.0
        %543 = vmatprep.mubr.f32.mxu0 0.0
        %544 = vmatmul.mubr.f32.gmra.mrb[0].mxu0 %v475
        %v545 = vpop.f32.mrb[0].mxu0
        %v546 = vadd.f32 %v470, %v545
        %v547 = vpop.f32.mrb[0].mxu0
        %548 = vdwg.mxu0
        %v549 = vmul.f32 %v546, 0.0625
        %v550 = vsel %vm474, %v549, -inf
        %551 = vmax.xlane.f32.xlu0 %v550
        %v552 = vpop.xlane.xlu0 %551
        %v553 = vsub.f32 %v549, %v552
        %v554 = vmul.f32 %v553, 1.442695
        %v555 = vpow.pop %v554
        %v556 = vsel %vm474, %v555, 0.0
        %557 = vadd.xlane.f32.xlu0 %v556
        %v558 = vpop.xlane.xlu0 %557
        %v559 = vrcp.pop %v558
        %v560 = vmul.f32 %v555, %v559
        %561 = vrot.lane.b32.xlu0 %v467, 64
        %v562 = vpop.permute.xlu0 %561
        %v565 = vsel %vm474, %v560, 0
        %567 = vmatprep.subr.mxu0 0.0
        %568 = vmatpush1.msra.mxu0 %v562
        %569 = vmatprep.subr.mxu0 0.0
        %570 = vmatpush1.msra.mxu0 0.0
        %571 = vmatprep.subr.mxu0 0.0
        %572 = vmatpush1.msra.mxu0 0.0
        %573 = vmatprep.subr.mxu0 0.0
        %574 = vmatpush1.msra.mxu0 0.0
        %575 = vmatprep.subr.mxu0 0.0
        %576 = vmatpush1.msra.mxu0 0.0
        %577 = vmatprep.subr.mxu0 0.0
        %578 = vmatpush1.msra.mxu0 0.0
        %579 = vmatprep.subr.mxu0 0.0
        %580 = vmatpush1.msra.mxu0 0.0
        %581 = vmatprep.subr.mxu0 0.0
        %582 = vmatpush1.msra.mxu0 0.0
        %583 = vmatprep.subr.mxu0 0.0
        %584 = vmatpush1.msra.mxu0 0.0
        %585 = vmatprep.subr.mxu0 0.0
        %586 = vmatpush1.msra.mxu0 0.0
        %587 = vmatprep.subr.mxu0 0.0
        %588 = vmatpush1.msra.mxu0 0.0
        %589 = vmatprep.subr.mxu0 0.0
        %590 = vmatpush1.msra.mxu0 0.0
        %591 = vmatprep.subr.mxu0 0.0
        %592 = vmatpush1.msra.mxu0 0.0
        %593 = vmatprep.subr.mxu0 0.0
        %594 = vmatpush1.msra.mxu0 0.0
        %595 = vmatprep.subr.mxu0 0.0
        %596 = vmatpush1.msra.mxu0 0.0
        %597 = vmatprep.subr.mxu0 0.0
        %598 = vmatpush1.msra.mxu0 0.0
        %599 = vmatprep.subr.mxu0 0.0
        %600 = vmatpush1.msra.mxu0 0.0
        %601 = vmatprep.subr.mxu0 0.0
        %602 = vmatpush1.msra.mxu0 0.0
        %603 = vmatprep.subr.mxu0 0.0
        %604 = vmatpush1.msra.mxu0 0.0
        %605 = vmatprep.subr.mxu0 0.0
        %606 = vmatpush1.msra.mxu0 0.0
        %607 = vmatprep.subr.mxu0 0.0
        %608 = vmatpush1.msra.mxu0 0.0
        %609 = vmatprep.subr.mxu0 0.0
        %610 = vmatpush1.msra.mxu0 0.0
        %611 = vmatprep.subr.mxu0 0.0
        %612 = vmatpush1.msra.mxu0 0.0
        %613 = vmatprep.subr.mxu0 0.0
        %614 = vmatpush1.msra.mxu0 0.0
        %615 = vmatprep.subr.mxu0 0.0
        %616 = vmatpush1.msra.mxu0 0.0
        %617 = vmatprep.subr.mxu0 0.0
        %618 = vmatpush1.msra.mxu0 0.0
        %619 = vmatprep.subr.mxu0 0.0
        %620 = vmatpush1.msra.mxu0 0.0
        %621 = vmatprep.subr.mxu0 0.0
        %622 = vmatpush1.msra.mxu0 0.0
        %623 = vmatprep.subr.mxu0 0.0
        %624 = vmatpush1.msra.mxu0 0.0
        %625 = vmatprep.subr.mxu0 0.0
        %626 = vmatpush1.msra.mxu0 0.0
        %627 = vmatprep.subr.mxu0 0.0
        %628 = vmatpush1.msra.mxu0 0.0
        %629 = vmatprep.subr.mxu0 0.0
        %630 = vmatpush1.msra.mxu0 0.0
        %631 = vmatprep.mubr.f32.mxu0 0.0
        %632 = vmatmul.mubr.f32.gmra.mrb[0].mxu0 %v565
        %v633 = vpop.f32.mrb[0].mxu0
        %v634 = vadd.f32 0.0, %v633
        %v635 = vpop.f32.mrb[0].mxu0
        %636 = vdwg.mxu0
        %637 = vrot.lane.b32.xlu0 %v467, 32
        %v638 = vpop.permute.xlu0 %637
        %v640 = vmul.f32 %v634, %v638
        %641 = vrot.lane.b32.xlu0 %v467, 120
        %v642 = vpop.permute.xlu0 %641
        %643 = vrot.lane.b32.xlu0 %v467, 88
        %v644 = vpop.permute.xlu0 %643
        %v645 = vsel %vm474, %v642, 0
        %v647 = vsel %vm474, %v644, 0
        %649 = vmatprep.subr.mxu0 0.0
        %650 = vmatpush1.xpose.msra.mxu0 %v647
        %651 = vmatprep.subr.mxu0 0.0
        %652 = vmatpush1.xpose.msra.mxu0 0.0
        %653 = vmatprep.subr.mxu0 0.0
        %654 = vmatpush1.xpose.msra.mxu0 0.0
        %655 = vmatprep.subr.mxu0 0.0
        %656 = vmatpush1.xpose.msra.mxu0 0.0
        %657 = vmatprep.subr.mxu0 0.0
        %658 = vmatpush1.xpose.msra.mxu0 0.0
        %659 = vmatprep.subr.mxu0 0.0
        %660 = vmatpush1.xpose.msra.mxu0 0.0
        %661 = vmatprep.subr.mxu0 0.0
        %662 = vmatpush1.xpose.msra.mxu0 0.0
        %663 = vmatprep.subr.mxu0 0.0
        %664 = vmatpush1.xpose.msra.mxu0 0.0
        %665 = vmatprep.subr.mxu0 0.0
        %666 = vmatpush1.xpose.msra.mxu0 0.0
        %667 = vmatprep.subr.mxu0 0.0
        %668 = vmatpush1.xpose.msra.mxu0 0.0
        %669 = vmatprep.subr.mxu0 0.0
        %670 = vmatpush1.xpose.msra.mxu0 0.0
        %671 = vmatprep.subr.mxu0 0.0
        %672 = vmatpush1.xpose.msra.mxu0 0.0
        %673 = vmatprep.subr.mxu0 0.0
        %674 = vmatpush1.xpose.msra.mxu0 0.0
        %675 = vmatprep.subr.mxu0 0.0
        %676 = vmatpush1.xpose.msra.mxu0 0.0
        %677 = vmatprep.subr.mxu0 0.0
        %678 = vmatpush1.xpose.msra.mxu0 0.0
        %679 = vmatprep.subr.mxu0 0.0
        %680 = vmatpush1.xpose.msra.mxu0 0.0
        %681 = vmatprep.subr.mxu0 0.0
        %682 = vmatpush1.xpose.msra.mxu0 0.0
        %683 = vmatprep.subr.mxu0 0.0
        %684 = vmatpush1.xpose.msra.mxu0 0.0
        %685 = vmatprep.subr.mxu0 0.0
        %686 = vmatpush1.xpose.msra.mxu0 0.0
        %687 = vmatprep.subr.mxu0 0.0
        %688 = vmatpush1.xpose.msra.mxu0 0.0
        %689 = vmatprep.subr.mxu0 0.0
        %690 = vmatpush1.xpose.msra.mxu0 0.0
        %691 = vmatprep.subr.mxu0 0.0
        %692 = vmatpush1.xpose.msra.mxu0 0.0
        %693 = vmatprep.subr.mxu0 0.0
        %694 = vmatpush1.xpose.msra.mxu0 0.0
        %695 = vmatprep.subr.mxu0 0.0
        %696 = vmatpush1.xpose.msra.mxu0 0.0
        %697 = vmatprep.subr.mxu0 0.0
        %698 = vmatpush1.xpose.msra.mxu0 0.0
        %699 = vmatprep.subr.mxu0 0.0
        %700 = vmatpush1.xpose.msra.mxu0 0.0
        %701 = vmatprep.subr.mxu0 0.0
        %702 = vmatpush1.xpose.msra.mxu0 0.0
        %703 = vmatprep.subr.mxu0 0.0
        %704 = vmatpush1.xpose.msra.mxu0 0.0
        %705 = vmatprep.subr.mxu0 0.0
        %706 = vmatpush1.xpose.msra.mxu0 0.0
        %707 = vmatprep.subr.mxu0 0.0
        %708 = vmatpush1.xpose.msra.mxu0 0.0
        %709 = vmatprep.subr.mxu0 0.0
        %710 = vmatpush1.xpose.msra.mxu0 0.0
        %711 = vmatprep.subr.mxu0 0.0
        %712 = vmatpush1.xpose.msra.mxu0 0.0
        %713 = vmatprep.mubr.f32.mxu0 0.0
        %714 = vmatmul.mubr.f32.gmra.mrb[0].mxu0 %v645
        %v715 = vpop.f32.mrb[0].mxu0
        %v716 = vadd.f32 %v470, %v715
        %v717 = vpop.f32.mrb[0].mxu0
        %718 = vdwg.mxu0
        %v719 = vmul.f32 %v716, 0.0625
        %v720 = vsel %vm474, %v719, -inf
        %721 = vmax.xlane.f32.xlu0 %v720
        %v722 = vpop.xlane.xlu0 %721
        %v723 = vsub.f32 %v719, %v722
        %v724 = vmul.f32 %v723, 1.442695
        %v725 = vpow.pop %v724
        %v726 = vsel %vm474, %v725, 0.0
        %727 = vadd.xlane.f32.xlu0 %v726
        %v728 = vpop.xlane.xlu0 %727
        %v729 = vrcp.pop %v728
        %v730 = vmul.f32 %v725, %v729
        %731 = vrot.lane.b32.xlu0 %v467, 56
        %v732 = vpop.permute.xlu0 %731
        %v735 = vsel %vm474, %v730, 0
        %737 = vmatprep.subr.mxu0 0.0
        %738 = vmatpush1.msra.mxu0 %v732
        %739 = vmatprep.subr.mxu0 0.0
        %740 = vmatpush1.msra.mxu0 0.0
        %741 = vmatprep.subr.mxu0 0.0
        %742 = vmatpush1.msra.mxu0 0.0
        %743 = vmatprep.subr.mxu0 0.0
        %744 = vmatpush1.msra.mxu0 0.0
        %745 = vmatprep.subr.mxu0 0.0
        %746 = vmatpush1.msra.mxu0 0.0
        %747 = vmatprep.subr.mxu0 0.0
        %748 = vmatpush1.msra.mxu0 0.0
        %749 = vmatprep.subr.mxu0 0.0
        %750 = vmatpush1.msra.mxu0 0.0
        %751 = vmatprep.subr.mxu0 0.0
        %752 = vmatpush1.msra.mxu0 0.0
        %753 = vmatprep.subr.mxu0 0.0
        %754 = vmatpush1.msra.mxu0 0.0
        %755 = vmatprep.subr.mxu0 0.0
        %756 = vmatpush1.msra.mxu0 0.0
        %757 = vmatprep.subr.mxu0 0.0
        %758 = vmatpush1.msra.mxu0 0.0
        %759 = vmatprep.subr.mxu0 0.0
        %760 = vmatpush1.msra.mxu0 0.0
        %761 = vmatprep.subr.mxu0 0.0
        %762 = vmatpush1.msra.mxu0 0.0
        %763 = vmatprep.subr.mxu0 0.0
        %764 = vmatpush1.msra.mxu0 0.0
        %765 = vmatprep.subr.mxu0 0.0
        %766 = vmatpush1.msra.mxu0 0.0
        %767 = vmatprep.subr.mxu0 0.0
        %768 = vmatpush1.msra.mxu0 0.0
        %769 = vmatprep.subr.mxu0 0.0
        %770 = vmatpush1.msra.mxu0 0.0
        %771 = vmatprep.subr.mxu0 0.0
        %772 = vmatpush1.msra.mxu0 0.0
        %773 = vmatprep.subr.mxu0 0.0
        %774 = vmatpush1.msra.mxu0 0.0
        %775 = vmatprep.subr.mxu0 0.0
        %776 = vmatpush1.msra.mxu0 0.0
        %777 = vmatprep.subr.mxu0 0.0
        %778 = vmatpush1.msra.mxu0 0.0
        %779 = vmatprep.subr.mxu0 0.0
        %780 = vmatpush1.msra.mxu0 0.0
        %781 = vmatprep.subr.mxu0 0.0
        %782 = vmatpush1.msra.mxu0 0.0
        %783 = vmatprep.subr.mxu0 0.0
        %784 = vmatpush1.msra.mxu0 0.0
        %785 = vmatprep.subr.mxu0 0.0
        %786 = vmatpush1.msra.mxu0 0.0
        %787 = vmatprep.subr.mxu0 0.0
        %788 = vmatpush1.msra.mxu0 0.0
        %789 = vmatprep.subr.mxu0 0.0
        %790 = vmatpush1.msra.mxu0 0.0
        %791 = vmatprep.subr.mxu0 0.0
        %792 = vmatpush1.msra.mxu0 0.0
        %793 = vmatprep.subr.mxu0 0.0
        %794 = vmatpush1.msra.mxu0 0.0
        %795 = vmatprep.subr.mxu0 0.0
        %796 = vmatpush1.msra.mxu0 0.0
        %797 = vmatprep.subr.mxu0 0.0
        %798 = vmatpush1.msra.mxu0 0.0
        %799 = vmatprep.subr.mxu0 0.0
        %800 = vmatpush1.msra.mxu0 0.0
        %801 = vmatprep.mubr.f32.mxu0 0.0
        %802 = vmatmul.mubr.f32.gmra.mrb[0].mxu0 %v735
        %v803 = vpop.f32.mrb[0].mxu0
        %v804 = vadd.f32 0.0, %v803
        %v805 = vpop.f32.mrb[0].mxu0
        %806 = vdwg.mxu0
        %807 = vrot.lane.b32.xlu0 %v467, 24
        %v808 = vpop.permute.xlu0 %807
        %v810 = vmul.f32 %v804, %v808
        %811 = vrot.lane.b32.xlu0 %v467, 112
        %v812 = vpop.permute.xlu0 %811
        %813 = vrot.lane.b32.xlu0 %v467, 80
        %v814 = vpop.permute.xlu0 %813
        %v815 = vsel %vm474, %v812, 0
        %v817 = vsel %vm474, %v814, 0
        %819 = vmatprep.subr.mxu0 0.0
        %820 = vmatpush1.xpose.msra.mxu0 %v817
        %821 = vmatprep.subr.mxu0 0.0
        %822 = vmatpush1.xpose.msra.mxu0 0.0
        %823 = vmatprep.subr.mxu0 0.0
        %824 = vmatpush1.xpose.msra.mxu0 0.0
        %825 = vmatprep.subr.mxu0 0.0
        %826 = vmatpush1.xpose.msra.mxu0 0.0
        %827 = vmatprep.subr.mxu0 0.0
        %828 = vmatpush1.xpose.msra.mxu0 0.0
        %829 = vmatprep.subr.mxu0 0.0
        %830 = vmatpush1.xpose.msra.mxu0 0.0
        %831 = vmatprep.subr.mxu0 0.0
        %832 = vmatpush1.xpose.msra.mxu0 0.0
        %833 = vmatprep.subr.mxu0 0.0
        %834 = vmatpush1.xpose.msra.mxu0 0.0
        %835 = vmatprep.subr.mxu0 0.0
        %836 = vmatpush1.xpose.msra.mxu0 0.0
        %837 = vmatprep.subr.mxu0 0.0
        %838 = vmatpush1.xpose.msra.mxu0 0.0
        %839 = vmatprep.subr.mxu0 0.0
        %840 = vmatpush1.xpose.msra.mxu0 0.0
        %841 = vmatprep.subr.mxu0 0.0
        %842 = vmatpush1.xpose.msra.mxu0 0.0
        %843 = vmatprep.subr.mxu0 0.0
        %844 = vmatpush1.xpose.msra.mxu0 0.0
        %845 = vmatprep.subr.mxu0 0.0
        %846 = vmatpush1.xpose.msra.mxu0 0.0
        %847 = vmatprep.subr.mxu0 0.0
        %848 = vmatpush1.xpose.msra.mxu0 0.0
        %849 = vmatprep.subr.mxu0 0.0
        %850 = vmatpush1.xpose.msra.mxu0 0.0
        %851 = vmatprep.subr.mxu0 0.0
        %852 = vmatpush1.xpose.msra.mxu0 0.0
        %853 = vmatprep.subr.mxu0 0.0
        %854 = vmatpush1.xpose.msra.mxu0 0.0
        %855 = vmatprep.subr.mxu0 0.0
        %856 = vmatpush1.xpose.msra.mxu0 0.0
        %857 = vmatprep.subr.mxu0 0.0
        %858 = vmatpush1.xpose.msra.mxu0 0.0
        %859 = vmatprep.subr.mxu0 0.0
        %860 = vmatpush1.xpose.msra.mxu0 0.0
        %861 = vmatprep.subr.mxu0 0.0
        %862 = vmatpush1.xpose.msra.mxu0 0.0
        %863 = vmatprep.subr.mxu0 0.0
        %864 = vmatpush1.xpose.msra.mxu0 0.0
        %865 = vmatprep.subr.mxu0 0.0
        %866 = vmatpush1.xpose.msra.mxu0 0.0
        %867 = vmatprep.subr.mxu0 0.0
        %868 = vmatpush1.xpose.msra.mxu0 0.0
        %869 = vmatprep.subr.mxu0 0.0
        %870 = vmatpush1.xpose.msra.mxu0 0.0
        %871 = vmatprep.subr.mxu0 0.0
        %872 = vmatpush1.xpose.msra.mxu0 0.0
        %873 = vmatprep.subr.mxu0 0.0
        %874 = vmatpush1.xpose.msra.mxu0 0.0
        %875 = vmatprep.subr.mxu0 0.0
        %876 = vmatpush1.xpose.msra.mxu0 0.0
        %877 = vmatprep.subr.mxu0 0.0
        %878 = vmatpush1.xpose.msra.mxu0 0.0
        %879 = vmatprep.subr.mxu0 0.0
        %880 = vmatpush1.xpose.msra.mxu0 0.0
        %881 = vmatprep.subr.mxu0 0.0
        %882 = vmatpush1.xpose.msra.mxu0 0.0
        %883 = vmatprep.mubr.f32.mxu0 0.0
        %884 = vmatmul.mubr.f32.gmra.mrb[0].mxu0 %v815
        %v885 = vpop.f32.mrb[0].mxu0
        %v886 = vadd.f32 %v470, %v885
        %v887 = vpop.f32.mrb[0].mxu0
        %888 = vdwg.mxu0
        %v889 = vmul.f32 %v886, 0.0625
        %v890 = vsel %vm474, %v889, -inf
        %891 = vmax.xlane.f32.xlu0 %v890
        %v892 = vpop.xlane.xlu0 %891
        %v893 = vsub.f32 %v889, %v892
        %v894 = vmul.f32 %v893, 1.442695
        %v895 = vpow.pop %v894
        %v896 = vsel %vm474, %v895, 0.0
        %897 = vadd.xlane.f32.xlu0 %v896
        %v898 = vpop.xlane.xlu0 %897
        %v899 = vrcp.pop %v898
        %v900 = vmul.f32 %v895, %v899
        %901 = vrot.lane.b32.xlu0 %v467, 48
        %v902 = vpop.permute.xlu0 %901
        %v905 = vsel %vm474, %v900, 0
        %907 = vmatprep.subr.mxu0 0.0
        %908 = vmatpush1.msra.mxu0 %v902
        %909 = vmatprep.subr.mxu0 0.0
        %910 = vmatpush1.msra.mxu0 0.0
        %911 = vmatprep.subr.mxu0 0.0
        %912 = vmatpush1.msra.mxu0 0.0
        %913 = vmatprep.subr.mxu0 0.0
        %914 = vmatpush1.msra.mxu0 0.0
        %915 = vmatprep.subr.mxu0 0.0
        %916 = vmatpush1.msra.mxu0 0.0
        %917 = vmatprep.subr.mxu0 0.0
        %918 = vmatpush1.msra.mxu0 0.0
        %919 = vmatprep.subr.mxu0 0.0
        %920 = vmatpush1.msra.mxu0 0.0
        %921 = vmatprep.subr.mxu0 0.0
        %922 = vmatpush1.msra.mxu0 0.0
        %923 = vmatprep.subr.mxu0 0.0
        %924 = vmatpush1.msra.mxu0 0.0
        %925 = vmatprep.subr.mxu0 0.0
        %926 = vmatpush1.msra.mxu0 0.0
        %927 = vmatprep.subr.mxu0 0.0
        %928 = vmatpush1.msra.mxu0 0.0
        %929 = vmatprep.subr.mxu0 0.0
        %930 = vmatpush1.msra.mxu0 0.0
        %931 = vmatprep.subr.mxu0 0.0
        %932 = vmatpush1.msra.mxu0 0.0
        %933 = vmatprep.subr.mxu0 0.0
        %934 = vmatpush1.msra.mxu0 0.0
        %935 = vmatprep.subr.mxu0 0.0
        %936 = vmatpush1.msra.mxu0 0.0
        %937 = vmatprep.subr.mxu0 0.0
        %938 = vmatpush1.msra.mxu0 0.0
        %939 = vmatprep.subr.mxu0 0.0
        %940 = vmatpush1.msra.mxu0 0.0
        %941 = vmatprep.subr.mxu0 0.0
        %942 = vmatpush1.msra.mxu0 0.0
        %943 = vmatprep.subr.mxu0 0.0
        %944 = vmatpush1.msra.mxu0 0.0
        %945 = vmatprep.subr.mxu0 0.0
        %946 = vmatpush1.msra.mxu0 0.0
        %947 = vmatprep.subr.mxu0 0.0
        %948 = vmatpush1.msra.mxu0 0.0
        %949 = vmatprep.subr.mxu0 0.0
        %950 = vmatpush1.msra.mxu0 0.0
        %951 = vmatprep.subr.mxu0 0.0
        %952 = vmatpush1.msra.mxu0 0.0
        %953 = vmatprep.subr.mxu0 0.0
        %954 = vmatpush1.msra.mxu0 0.0
        %955 = vmatprep.subr.mxu0 0.0
        %956 = vmatpush1.msra.mxu0 0.0
        %957 = vmatprep.subr.mxu0 0.0
        %958 = vmatpush1.msra.mxu0 0.0
        %959 = vmatprep.subr.mxu0 0.0
        %960 = vmatpush1.msra.mxu0 0.0
        %961 = vmatprep.subr.mxu0 0.0
        %962 = vmatpush1.msra.mxu0 0.0
        %963 = vmatprep.subr.mxu0 0.0
        %964 = vmatpush1.msra.mxu0 0.0
        %965 = vmatprep.subr.mxu0 0.0
        %966 = vmatpush1.msra.mxu0 0.0
        %967 = vmatprep.subr.mxu0 0.0
        %968 = vmatpush1.msra.mxu0 0.0
        %969 = vmatprep.subr.mxu0 0.0
        %970 = vmatpush1.msra.mxu0 0.0
        %971 = vmatprep.mubr.f32.mxu0 0.0
        %972 = vmatmul.mubr.f32.gmra.mrb[0].mxu0 %v905
        %v973 = vpop.f32.mrb[0].mxu0
        %v974 = vadd.f32 0.0, %v973
        %v975 = vpop.f32.mrb[0].mxu0
        %976 = vdwg.mxu0
        %977 = vrot.lane.b32.xlu0 %v467, 16
        %v978 = vpop.permute.xlu0 %977
        %v980 = vmul.f32 %v974, %v978
        %981 = vrot.lane.b32.xlu0 %v467, 104
        %v982 = vpop.permute.xlu0 %981
        %983 = vrot.lane.b32.xlu0 %v467, 72
        %v984 = vpop.permute.xlu0 %983
        %v985 = vsel %vm474, %v982, 0
        %v987 = vsel %vm474, %v984, 0
        %989 = vmatprep.subr.mxu0 0.0
        %990 = vmatpush1.xpose.msra.mxu0 %v987
        %991 = vmatprep.subr.mxu0 0.0
        %992 = vmatpush1.xpose.msra.mxu0 0.0
        %993 = vmatprep.subr.mxu0 0.0
        %994 = vmatpush1.xpose.msra.mxu0 0.0
        %995 = vmatprep.subr.mxu0 0.0
        %996 = vmatpush1.xpose.msra.mxu0 0.0
        %997 = vmatprep.subr.mxu0 0.0
        %998 = vmatpush1.xpose.msra.mxu0 0.0
        %999 = vmatprep.subr.mxu0 0.0
        %1000 = vmatpush1.xpose.msra.mxu0 0.0
        %1001 = vmatprep.subr.mxu0 0.0
        %1002 = vmatpush1.xpose.msra.mxu0 0.0
        %1003 = vmatprep.subr.mxu0 0.0
        %1004 = vmatpush1.xpose.msra.mxu0 0.0
        %1005 = vmatprep.subr.mxu0 0.0
        %1006 = vmatpush1.xpose.msra.mxu0 0.0
        %1007 = vmatprep.subr.mxu0 0.0
        %1008 = vmatpush1.xpose.msra.mxu0 0.0
        %1009 = vmatprep.subr.mxu0 0.0
        %1010 = vmatpush1.xpose.msra.mxu0 0.0
        %1011 = vmatprep.subr.mxu0 0.0
        %1012 = vmatpush1.xpose.msra.mxu0 0.0
        %1013 = vmatprep.subr.mxu0 0.0
        %1014 = vmatpush1.xpose.msra.mxu0 0.0
        %1015 = vmatprep.subr.mxu0 0.0
        %1016 = vmatpush1.xpose.msra.mxu0 0.0
        %1017 = vmatprep.subr.mxu0 0.0
        %1018 = vmatpush1.xpose.msra.mxu0 0.0
        %1019 = vmatprep.subr.mxu0 0.0
        %1020 = vmatpush1.xpose.msra.mxu0 0.0
        %1021 = vmatprep.subr.mxu0 0.0
        %1022 = vmatpush1.xpose.msra.mxu0 0.0
        %1023 = vmatprep.subr.mxu0 0.0
        %1024 = vmatpush1.xpose.msra.mxu0 0.0
        %1025 = vmatprep.subr.mxu0 0.0
        %1026 = vmatpush1.xpose.msra.mxu0 0.0
        %1027 = vmatprep.subr.mxu0 0.0
        %1028 = vmatpush1.xpose.msra.mxu0 0.0
        %1029 = vmatprep.subr.mxu0 0.0
        %1030 = vmatpush1.xpose.msra.mxu0 0.0
        %1031 = vmatprep.subr.mxu0 0.0
        %1032 = vmatpush1.xpose.msra.mxu0 0.0
        %1033 = vmatprep.subr.mxu0 0.0
        %1034 = vmatpush1.xpose.msra.mxu0 0.0
        %1035 = vmatprep.subr.mxu0 0.0
        %1036 = vmatpush1.xpose.msra.mxu0 0.0
        %1037 = vmatprep.subr.mxu0 0.0
        %1038 = vmatpush1.xpose.msra.mxu0 0.0
        %1039 = vmatprep.subr.mxu0 0.0
        %1040 = vmatpush1.xpose.msra.mxu0 0.0
        %1041 = vmatprep.subr.mxu0 0.0
        %1042 = vmatpush1.xpose.msra.mxu0 0.0
        %1043 = vmatprep.subr.mxu0 0.0
        %1044 = vmatpush1.xpose.msra.mxu0 0.0
        %1045 = vmatprep.subr.mxu0 0.0
        %1046 = vmatpush1.xpose.msra.mxu0 0.0
        %1047 = vmatprep.subr.mxu0 0.0
        %1048 = vmatpush1.xpose.msra.mxu0 0.0
        %1049 = vmatprep.subr.mxu0 0.0
        %1050 = vmatpush1.xpose.msra.mxu0 0.0
        %1051 = vmatprep.subr.mxu0 0.0
        %1052 = vmatpush1.xpose.msra.mxu0 0.0
        %1053 = vmatprep.mubr.f32.mxu0 0.0
        %1054 = vmatmul.mubr.f32.gmra.mrb[0].mxu0 %v985
        %v1055 = vpop.f32.mrb[0].mxu0
        %v1056 = vadd.f32 %v470, %v1055
        %v1057 = vpop.f32.mrb[0].mxu0
        %1058 = vdwg.mxu0
        %v1059 = vmul.f32 %v1056, 0.0625
        %v1060 = vsel %vm474, %v1059, -inf
        %1061 = vmax.xlane.f32.xlu0 %v1060
        %v1062 = vpop.xlane.xlu0 %1061
        %v1063 = vsub.f32 %v1059, %v1062
        %v1064 = vmul.f32 %v1063, 1.442695
        %v1065 = vpow.pop %v1064
        %v1066 = vsel %vm474, %v1065, 0.0
        %1067 = vadd.xlane.f32.xlu0 %v1066
        %v1068 = vpop.xlane.xlu0 %1067
        %v1069 = vrcp.pop %v1068
        %v1070 = vmul.f32 %v1065, %v1069
        %1071 = vrot.lane.b32.xlu0 %v467, 40
        %v1072 = vpop.permute.xlu0 %1071
        %v1075 = vsel %vm474, %v1070, 0
        %1077 = vmatprep.subr.mxu0 0.0
        %1078 = vmatpush1.msra.mxu0 %v1072
        %1079 = vmatprep.subr.mxu0 0.0
        %1080 = vmatpush1.msra.mxu0 0.0
        %1081 = vmatprep.subr.mxu0 0.0
        %1082 = vmatpush1.msra.mxu0 0.0
        %1083 = vmatprep.subr.mxu0 0.0
        %1084 = vmatpush1.msra.mxu0 0.0
        %1085 = vmatprep.subr.mxu0 0.0
        %1086 = vmatpush1.msra.mxu0 0.0
        %1087 = vmatprep.subr.mxu0 0.0
        %1088 = vmatpush1.msra.mxu0 0.0
        %1089 = vmatprep.subr.mxu0 0.0
        %1090 = vmatpush1.msra.mxu0 0.0
        %1091 = vmatprep.subr.mxu0 0.0
        %1092 = vmatpush1.msra.mxu0 0.0
        %1093 = vmatprep.subr.mxu0 0.0
        %1094 = vmatpush1.msra.mxu0 0.0
        %1095 = vmatprep.subr.mxu0 0.0
        %1096 = vmatpush1.msra.mxu0 0.0
        %1097 = vmatprep.subr.mxu0 0.0
        %1098 = vmatpush1.msra.mxu0 0.0
        %1099 = vmatprep.subr.mxu0 0.0
        %1100 = vmatpush1.msra.mxu0 0.0
        %1101 = vmatprep.subr.mxu0 0.0
        %1102 = vmatpush1.msra.mxu0 0.0
        %1103 = vmatprep.subr.mxu0 0.0
        %1104 = vmatpush1.msra.mxu0 0.0
        %1105 = vmatprep.subr.mxu0 0.0
        %1106 = vmatpush1.msra.mxu0 0.0
        %1107 = vmatprep.subr.mxu0 0.0
        %1108 = vmatpush1.msra.mxu0 0.0
        %1109 = vmatprep.subr.mxu0 0.0
        %1110 = vmatpush1.msra.mxu0 0.0
        %1111 = vmatprep.subr.mxu0 0.0
        %1112 = vmatpush1.msra.mxu0 0.0
        %1113 = vmatprep.subr.mxu0 0.0
        %1114 = vmatpush1.msra.mxu0 0.0
        %1115 = vmatprep.subr.mxu0 0.0
        %1116 = vmatpush1.msra.mxu0 0.0
        %1117 = vmatprep.subr.mxu0 0.0
        %1118 = vmatpush1.msra.mxu0 0.0
        %1119 = vmatprep.subr.mxu0 0.0
        %1120 = vmatpush1.msra.mxu0 0.0
        %1121 = vmatprep.subr.mxu0 0.0
        %1122 = vmatpush1.msra.mxu0 0.0
        %1123 = vmatprep.subr.mxu0 0.0
        %1124 = vmatpush1.msra.mxu0 0.0
        %1125 = vmatprep.subr.mxu0 0.0
        %1126 = vmatpush1.msra.mxu0 0.0
        %1127 = vmatprep.subr.mxu0 0.0
        %1128 = vmatpush1.msra.mxu0 0.0
        %1129 = vmatprep.subr.mxu0 0.0
        %1130 = vmatpush1.msra.mxu0 0.0
        %1131 = vmatprep.subr.mxu0 0.0
        %1132 = vmatpush1.msra.mxu0 0.0
        %1133 = vmatprep.subr.mxu0 0.0
        %1134 = vmatpush1.msra.mxu0 0.0
        %1135 = vmatprep.subr.mxu0 0.0
        %1136 = vmatpush1.msra.mxu0 0.0
        %1137 = vmatprep.subr.mxu0 0.0
        %1138 = vmatpush1.msra.mxu0 0.0
        %1139 = vmatprep.subr.mxu0 0.0
        %1140 = vmatpush1.msra.mxu0 0.0
        %1141 = vmatprep.mubr.f32.mxu0 0.0
        %1142 = vmatmul.mubr.f32.gmra.mrb[0].mxu0 %v1075
        %v1143 = vpop.f32.mrb[0].mxu0
        %v1144 = vadd.f32 0.0, %v1143
        %v1145 = vpop.f32.mrb[0].mxu0
        %1146 = vdwg.mxu0
        %1147 = vrot.lane.b32.xlu0 %v467, 8
        %v1148 = vpop.permute.xlu0 %1147
        %v1150 = vmul.f32 %v1144, %v1148
        %1152 = vrot.lane.b32.xlu0 %v810, 8
        %v1153 = vpop.permute.xlu0 %1152
        %1156 = vrot.lane.b32.xlu0 %v980, 16
        %v1157 = vpop.permute.xlu0 %1156
        %1160 = vrot.lane.b32.xlu0 %v1150, 24
        %v1161 = vpop.permute.xlu0 %1160
        %v1163 = vsel %vm474, %v640, %v1153
        %vm1164 = vcmask 130048
        %v1165 = vsel %vm1164, %v1163, %v1157
        %vm1166 = vcmask 195584
        %v1167 = vsel %vm1166, %v1165, %v1161
        %v1168 = vld [vmem:[#allocation8] sm:$0xff]
        %v1169 = vld [vmem:[#allocation8 + $0x8] sm:$0xff]
        %v1170 = vld [vmem:[#allocation8 + $0x10] sm:$0xff]
        %v1171 = vld [vmem:[#allocation8 + $0x18] sm:$0xff]
        %v1172 = vld [vmem:[%s5] sm:$0x1]
        %v1174 = vlaneseq
        %v1175 = vshrl.u32 %v1174, 7
        %v1176 = vsub.s32 0, %v1175
        %v1177 = vrot.slane %v1172, %v1176
        %v1180 = vsel %vm396, %v1167, 0
        %1182 = vmatprep.subr.mxu0 0.0
        %1183 = vmatpush1.msra.mxu0 %v1168
        %1184 = vmatprep.subr.mxu0 0.0
        %1185 = vmatpush1.msra.mxu0 %v1169
        %1186 = vmatprep.subr.mxu0 0.0
        %1187 = vmatpush1.msra.mxu0 %v1170
        %1188 = vmatprep.subr.mxu0 0.0
        %1189 = vmatpush1.msra.mxu0 %v1171
        %1190 = vmatprep.subr.mxu0 0.0
        %1191 = vmatpush1.msra.mxu0 0.0
        %1192 = vmatprep.subr.mxu0 0.0
        %1193 = vmatpush1.msra.mxu0 0.0
        %1194 = vmatprep.subr.mxu0 0.0
        %1195 = vmatpush1.msra.mxu0 0.0
        %1196 = vmatprep.subr.mxu0 0.0
        %1197 = vmatpush1.msra.mxu0 0.0
        %1198 = vmatprep.subr.mxu0 0.0
        %1199 = vmatpush1.msra.mxu0 0.0
        %1200 = vmatprep.subr.mxu0 0.0
        %1201 = vmatpush1.msra.mxu0 0.0
        %1202 = vmatprep.subr.mxu0 0.0
        %1203 = vmatpush1.msra.mxu0 0.0
        %1204 = vmatprep.subr.mxu0 0.0
        %1205 = vmatpush1.msra.mxu0 0.0
        %1206 = vmatprep.subr.mxu0 0.0
        %1207 = vmatpush1.msra.mxu0 0.0
        %1208 = vmatprep.subr.mxu0 0.0
        %1209 = vmatpush1.msra.mxu0 0.0
        %1210 = vmatprep.subr.mxu0 0.0
        %1211 = vmatpush1.msra.mxu0 0.0
        %1212 = vmatprep.subr.mxu0 0.0
        %1213 = vmatpush1.msra.mxu0 0.0
        %1214 = vmatprep.subr.mxu0 0.0
        %1215 = vmatpush1.msra.mxu0 0.0
        %1216 = vmatprep.subr.mxu0 0.0
        %1217 = vmatpush1.msra.mxu0 0.0
        %1218 = vmatprep.subr.mxu0 0.0
        %1219 = vmatpush1.msra.mxu0 0.0
        %1220 = vmatprep.subr.mxu0 0.0
        %1221 = vmatpush1.msra.mxu0 0.0
        %1222 = vmatprep.subr.mxu0 0.0
        %1223 = vmatpush1.msra.mxu0 0.0
        %1224 = vmatprep.subr.mxu0 0.0
        %1225 = vmatpush1.msra.mxu0 0.0
        %1226 = vmatprep.subr.mxu0 0.0
        %1227 = vmatpush1.msra.mxu0 0.0
        %1228 = vmatprep.subr.mxu0 0.0
        %1229 = vmatpush1.msra.mxu0 0.0
        %1230 = vmatprep.subr.mxu0 0.0
        %1231 = vmatpush1.msra.mxu0 0.0
        %1232 = vmatprep.subr.mxu0 0.0
        %1233 = vmatpush1.msra.mxu0 0.0
        %1234 = vmatprep.subr.mxu0 0.0
        %1235 = vmatpush1.msra.mxu0 0.0
        %1236 = vmatprep.subr.mxu0 0.0
        %1237 = vmatpush1.msra.mxu0 0.0
        %1238 = vmatprep.subr.mxu0 0.0
        %1239 = vmatpush1.msra.mxu0 0.0
        %1240 = vmatprep.subr.mxu0 0.0
        %1241 = vmatpush1.msra.mxu0 0.0
        %1242 = vmatprep.subr.mxu0 0.0
        %1243 = vmatpush1.msra.mxu0 0.0
        %1244 = vmatprep.subr.mxu0 0.0
        %1245 = vmatpush1.msra.mxu0 0.0
        %1246 = vmatprep.mubr.f32.mxu0 0.0
        %1247 = vmatmul.mubr.f32.gmra.mrb[0].mxu0 %v1180
        %v1248 = vpop.f32.mrb[0].mxu0
        %v1249 = vadd.f32 %v1177, %v1248
        %v1250 = vpop.f32.mrb[0].mxu0
        %1251 = vdwg.mxu0
        %v1252 = vadd.f32 %v1249, %v384
        %v1253 = vsel %vm396, %v1252, 0.0
        %1254 = vadd.xlane.f32.xlu0 %v1253
        %v1255 = vpop.xlane.xlu0 %1254
        %v1256 = vrcp.pop 32.0
        %v1257 = vmul.f32 %v1255, %v1256
        %v1258 = vsub.f32 %v1252, %v1257
        %v1259 = vmul.f32 %v1258, %v1258
        %v1260 = vsel %vm396, %v1259, 0.0
        %1261 = vadd.xlane.f32.xlu0 %v1260
        %v1262 = vpop.xlane.xlu0 %1261
        %v1263 = vmul.f32 %v1262, %v1256
        %v1264 = vadd.f32 %v1263, 1e-05
        %v1265 = vrsqrt.pop %v1264
        %v1266 = vmul.f32 %v1258, %v1265
        %v1267 = vld [vmem:[%s6] sm:$0x1]
        %v1269 = vlaneseq
        %v1270 = vshrl.u32 %v1269, 7
        %v1271 = vsub.s32 0, %v1270
        %v1272 = vrot.slane %v1267, %v1271
        %v1274 = vmul.f32 %v1266, %v1272
        %v1275 = vld [vmem:[%s7] sm:$0x1]
        %v1277 = vlaneseq
        %v1278 = vshrl.u32 %v1277, 7
        %v1279 = vsub.s32 0, %v1278
        %v1280 = vrot.slane %v1275, %v1279
        %v1282 = vadd.f32 %v1274, %v1280
        %1283 = vst.msk [vmem:[%s383] sm:$0xff] %vm396, %v1282
        %s1284 = sand.u32 %s212, 1
        %s1285 = scalar_lea.sflag [#allocation4], %s1284
        %s1286 = sand.u32 %s212, 1
        %s1287 = smul.addr %s1286, 8
        %s1288 = scalar_lea.vmem [#allocation9], %s1287
        // Predicated region
        $region69: #{tpu_custom_call.1} parent=51 // pred_check
          %p1289 = pneg %p222
        $region70: #{tpu_custom_call.1} parent=51 // pred_check_branch
          %1291 = sbr.rel (%p1289) target = $region72
        $region71: #{tpu_custom_call.1} parent=51 // pred_region
          %s1293 = ssub.s32 128, 128
          %1294 = vsyncadd %s1285, %s1293
          %s1295 = smul.addr %s26, 128
          %s1296 = scalar_lea.hbm %s8, %s1295
          %s1298 = sshll.u32 %s1288, 4
          %s1299 = int_to_ptr.vmem [resolvable:$true] %s1298
          %1301 = dma.vmem_to_hbm [thread:$0]  %s1299, 128, %s1296, %s1285
        $region72: #{tpu_custom_call.1} parent=51 // pred_fallthru
          _
      $region52: #{tpu_custom_call.1} parent=5 // pred_fallthru
        _
      %p1302 = scmp.le.s32.totalorder 2, %s21
      // Predicated region
      $region73: #{tpu_custom_call.1} parent=5 // pred_check
        %p1303 = pneg %p1302
      $region74: #{tpu_custom_call.1} parent=5 // pred_check_branch
        %1305 = sbr.rel (%p1303) target = $region76
      $region75: #{tpu_custom_call.1} parent=5 // pred_region
        %s1306 = ssub.s32 %s21, 2
        // Predicated region
        $region77: #{tpu_custom_call.1} parent=75 // pred_check
          %p1307 = pneg %p228
        $region78: #{tpu_custom_call.1} parent=75 // pred_check_branch
          %1309 = sbr.rel (%p1307) target = $region80
        $region79: #{tpu_custom_call.1} parent=75 // pred_region
          %s1310 = sand.u32 %s213, 1
          %s1311 = scalar_lea.sflag [#allocation4], %s1310
          %s1312 = sand.u32 %s213, 1
          %s1313 = smul.addr %s1312, 8
          %s1314 = scalar_lea.vmem [#allocation9], %s1313
          %1315 = dma.done %s1311, 128
        $region80: #{tpu_custom_call.1} parent=75 // pred_fallthru
          _
      $region76: #{tpu_custom_call.1} parent=5 // pred_fallthru
        _
    $region6: #{tpu_custom_call.1} parent=1 // loop_footer
      %s25 = sadd.s32 1, %s21
    $region7: #{tpu_custom_call.1} parent=1 // loop_footer_branch
      %20 = sbr.rel target = $region3
    $region8: #{tpu_custom_call.1} parent=1 // loop_exit
      _
    %1316 = vsyncpa [#allocation3], 1
    %s1317 = scalar_lea.sflag [#allocation3], 1
    %1318 = vsyncpa %s1317, 1
    %1319 = vsyncpa [#allocation6], 1
    %1320 = vsyncpa [#allocation4], 1
    %s1321 = scalar_lea.sflag [#allocation4], 1
    %1322 = vsyncpa %s1321, 1

</llo_original>
